<compile_context>
chip_gen: v7x
topology: tpu7x:2x2x1
jax: 0.10.0
libtpu: 0.0.40
codegen_flags: <defaults>
</compile_context>

<pallas_src>
import functools

import jax
import jax.numpy as jnp
from jax.experimental import pallas as pl
from jax.experimental.pallas import tpu as pltpu


def autopad(k, p=None, d=1):
    """Pad to 'same' shape outputs (mirrors the PyTorch helper)."""
    if d > 1:
        k = d * (k - 1) + 1 if isinstance(k, int) else [d * (x - 1) + 1 for x in k]
    if p is None:
        p = k // 2 if isinstance(k, int) else [x // 2 for x in k]
    return p


def _round_up(x, m):
    return (x + m - 1) // m * m


def _silu_f32(y):
    # exp lands on the EUP; use approx=True for the reciprocal only if the
    # epilogue ever shows up as VALU-bound (slightly lower precision).
    return y * pl.reciprocal(1.0 + jnp.exp(-y), approx=False)


def _vmem_limit(est_bytes):
    return int(min(max(2 * est_bytes, 32 * 2**20), 64 * 2**20))


# ---------------------------------------------------------------------------
# Path 1 kernel: fused in-kernel im2col + GEMM + bias + SiLU   (stride == 1)
# ---------------------------------------------------------------------------
def _fused_conv_kernel(x_ref, w_ref, b_ref, o_ref, *, k, d, tile_h, Wo, Cin):
    """Grid = (N, cout_tiles, h_row_tiles).

    x_ref: (1, Hp, Wp, Cin)      padded NHWC image, resident across (c, t)
    w_ref: (K, TC)               conv weights * BN scale, K = k*k*Cin (kh,kw,c)
    b_ref: (1, TC)               fused BN bias (f32)
    o_ref: (1, 1, tile_h*Wo, TC) flattened output row-tile
    """
    t = pl.program_id(2)
    h0 = t * tile_h

    # Build the patch block from k*k shifted views of the resident image
    # (VMEM-local relayouts only; no redundant HBM traffic).
    pieces = []
    for kh in range(k):
        for kw in range(k):
            pieces.append(
                x_ref[0, pl.ds(h0 + kh * d, tile_h), kw * d: kw * d + Wo, :])
    patches = jnp.concatenate(pieces, axis=-1)            # (tile_h, Wo, K)
    patches = patches.reshape(tile_h * Wo, k * k * Cin)   # (tm, K)

    acc = jnp.dot(patches, w_ref[...], preferred_element_type=jnp.float32)
    y = _silu_f32(acc + b_ref[...])
    o_ref[0, 0, :, :] = y.astype(o_ref.dtype)


# ---------------------------------------------------------------------------
# Path 2 kernel: GEMM + bias + SiLU on wrapper-built patches   (stride > 1)
# ---------------------------------------------------------------------------
def _gemm_bias_silu_kernel(p_ref, w_ref, b_ref, o_ref):
    """p_ref: (tm, K)  w_ref: (K, TC)  b_ref: (1, TC)  o_ref: (tm, TC)."""
    acc = jnp.dot(p_ref[...], w_ref[...], preferred_element_type=jnp.float32)
    y = _silu_f32(acc + b_ref[...])
    o_ref[...] = y.astype(o_ref.dtype)


# ---------------------------------------------------------------------------
# Wrapper
# ---------------------------------------------------------------------------
def conv_bn_silu(x_nchw, weight, gamma, beta, running_mean, running_var,
                 *, k=3, s=1, p=None, d=1, g=1, eps=1e-5,
                 compute_dtype=jnp.bfloat16, out_dtype=None,
                 tile_m=512, tile_cout=256, fuse_im2col=True):
    """Conv2d(bias=False, groups=1) + BatchNorm2d(eval) + SiLU.

    x_nchw: (N, Cin, H, W); weight: (Cout, Cin, k, k) (PyTorch layout).
    compute_dtype: MXU operand dtype (bf16 default on v5e/v6e/v7x); accumulation
    is always f32.
    """
    assert g == 1, "grouped conv not implemented"  # TODO(synk): groups > 1
    p = autopad(k, p, d)
    N, Cin, H, W = x_nchw.shape
    Cout = weight.shape[0]
    kd = d * (k - 1) + 1                       # effective (dilated) kernel extent
    Ho = (H + 2 * p - kd) // s + 1
    Wo = (W + 2 * p - kd) // s + 1
    out_dtype = x_nchw.dtype if out_dtype is None else out_dtype
    cd_size = jnp.dtype(compute_dtype).itemsize
    od_size = jnp.dtype(out_dtype).itemsize
    K = k * k * Cin

    # ---- fold BN (eval mode) into weights / bias ----
    scale = gamma / jnp.sqrt(running_var + eps)                    # (Cout,)
    bias = beta - running_mean * scale                             # (Cout,)
    w2 = (jnp.transpose(weight, (2, 3, 1, 0)) * scale).reshape(K, Cout)

    # ---- Cout tiling: lane-dense tiles for Cout >= 64, unpadded (masked
    #      store, full-dim exception) for small Cout ----
    if Cout >= 64:
        Cout_eff = _round_up(Cout, 128)
        tc = 256 if (Cout_eff % 256 == 0 and tile_cout >= 256) else 128
        tc = min(tc, Cout_eff, max(128, _round_up(tile_cout, 128)))
    else:
        Cout_eff = Cout
        tc = Cout
    n_ct = Cout_eff // tc
    w2 = jnp.pad(w2, ((0, 0), (0, Cout_eff - Cout))).astype(compute_dtype)
    bias2 = jnp.pad(bias, (0, Cout_eff - Cout)).reshape(1, Cout_eff).astype(jnp.float32)

    # TODO(synk): keep the surrounding model NHWC end-to-end to drop these
    # layout transposes (pure HBM plumbing).
    x = jnp.transpose(x_nchw, (0, 2, 3, 1)).astype(compute_dtype)  # NHWC, bf16/f32

    flops = 2 * N * Ho * Wo * K * Cout
    trans = N * Ho * Wo * Cout

    if s == 1 and fuse_im2col:
        # ------------------- Path 1: fused in-kernel im2col -------------------
        tile_h = max(1, min(Ho, max(1, tile_m // max(Wo, 1))))
        T = -(-Ho // tile_h)
        Ho_p = T * tile_h
        Hp = max(H + 2 * p, Ho_p + kd - 1)       # extra bottom zero rows -> garbage
        Wp = max(W + 2 * p, Wo + kd - 1)         # rows/cols are sliced off below
        xp = jnp.pad(x, ((0, 0), (p, Hp - H - p), (p, Wp - W - p), (0, 0)))

        tm = tile_h * Wo
        kern = functools.partial(_fused_conv_kernel,
                                 k=k, d=d, tile_h=tile_h, Wo=Wo, Cin=Cin)
        est = (2 * Hp * _round_up(Wp, 8) * max(Cin, 128) * cd_size   # input block
               + 2 * K * tc * cd_size                                # weight tile
               + 2 * tm * max(tc, 128) * od_size                     # output tile
               + 2 * tm * _round_up(K, 128) * 4)                     # patch scratch
        bytes_acc = (xp.size * cd_size + w2.size * cd_size
                     + N * Ho_p * Wo * Cout_eff * od_size)

        out_flat = pl.pallas_call(
            kern,
            out_shape=jax.ShapeDtypeStruct((N, T, tm, Cout_eff), out_dtype),
            grid_spec=pltpu.PrefetchScalarGridSpec(
                num_scalar_prefetch=0,
                grid=(N, n_ct, T),
                in_specs=[
                    # whole padded image, resident across (cout, row-tile) axes
                    pl.BlockSpec((1, Hp, Wp, Cin), lambda n, c, t: (n, 0, 0, 0)),
                    pl.BlockSpec((K, tc), lambda n, c, t: (0, c)),
                    pl.BlockSpec((1, tc), lambda n, c, t: (0, c)),
                ],
                out_specs=pl.BlockSpec((1, 1, tm, tc),
                                       lambda n, c, t: (n, t, 0, c)),
            ),
            compiler_params=pltpu.CompilerParams(
                dimension_semantics=("parallel", "parallel", "parallel"),
                vmem_limit_bytes=_vmem_limit(est)),
            cost_estimate=pl.CostEstimate(flops=flops, transcendentals=trans,
                                          bytes_accessed=int(bytes_acc)),
        )(xp, w2, bias2)

        out = out_flat.reshape(N, Ho_p, Wo, Cout_eff)[:, :Ho, :, :Cout]

    else:
        # --------- Path 2: wrapper im2col (strided convs), un-padded K ---------
        xp = jnp.pad(x, ((0, 0), (p, p), (p, p), (0, 0)))
        cols = []
        for kh in range(k):
            for kw in range(k):
                cols.append(xp[:, kh * d: kh * d + (Ho - 1) * s + 1: s,
                                  kw * d: kw * d + (Wo - 1) * s + 1: s, :])
        patches = jnp.concatenate(cols, axis=-1).reshape(N * Ho * Wo, K)

        M = N * Ho * Wo
        tm = _round_up(min(tile_m, _round_up(M, 16)), 16)   # 16-row align for bf16
        M_p = _round_up(M, tm)
        patches = jnp.pad(patches, ((0, M_p - M), (0, 0)))

        est = (2 * tm * _round_up(K, 128) * cd_size
               + 2 * K * tc * cd_size
               + 2 * tm * max(tc, 128) * od_size)
        bytes_acc = (patches.size * cd_size + w2.size * cd_size
                     + M_p * Cout_eff * od_size)

        out_flat = pl.pallas_call(
            _gemm_bias_silu_kernel,
            out_shape=jax.ShapeDtypeStruct((M_p, Cout_eff), out_dtype),
            grid_spec=pltpu.PrefetchScalarGridSpec(
                num_scalar_prefetch=0,
                grid=(n_ct, M_p // tm),
                in_specs=[
                    pl.BlockSpec((tm, K), lambda c, i: (i, 0)),   # row-streamed
                    pl.BlockSpec((K, tc), lambda c, i: (0, c)),   # resident per c
                    pl.BlockSpec((1, tc), lambda c, i: (0, c)),
                ],
                out_specs=pl.BlockSpec((tm, tc), lambda c, i: (i, c)),
            ),
            compiler_params=pltpu.CompilerParams(
                dimension_semantics=("parallel", "parallel"),
                vmem_limit_bytes=_vmem_limit(est)),
            cost_estimate=pl.CostEstimate(flops=flops, transcendentals=trans,
                                          bytes_accessed=int(bytes_acc)),
        )(patches, w2, bias2)

        out = out_flat[:M, :Cout].reshape(N, Ho, Wo, Cout)

    return jnp.transpose(out, (0, 3, 1, 2))                 # back to NCHW


# ---------------------------------------------------------------------------
# Pure-JAX reference for correctness checking
# ---------------------------------------------------------------------------
def _reference(x_nchw, weight, gamma, beta, running_mean, running_var,
               *, k=3, s=1, p=None, d=1, eps=1e-5):
    p = autopad(k, p, d)
    y = jax.lax.conv_general_dilated(
        x_nchw, weight,
        window_strides=(s, s),
        padding=((p, p), (p, p)),
        rhs_dilation=(d, d),
        dimension_numbers=("NCHW", "OIHW", "NCHW"),
        precision=jax.lax.Precision.HIGHEST)
    scale = (gamma / jnp.sqrt(running_var + eps)).reshape(1, -1, 1, 1)
    bias = (beta - running_mean * gamma / jnp.sqrt(running_var + eps)).reshape(1, -1, 1, 1)
    y = y * scale + bias
    return y * jax.nn.sigmoid(y)


if __name__ == "__main__":
    key = jax.random.PRNGKey(0)
    k1, k2, k3, k4 = jax.random.split(key, 4)

    # Conv(c1=4, c2=8, k=3) with defaults p=None (-> 1), g=1, d=1, act=True
    N, Cin, H, W = 2, 4, 16, 16
    Cout, ksz = 8, 3

    x = jax.random.normal(k1, (N, Cin, H, W), jnp.float32)
    weight = jax.random.normal(k2, (Cout, Cin, ksz, ksz), jnp.float32) * 0.1
    gamma = jax.random.uniform(k3, (Cout,), jnp.float32, 0.5, 1.5)
    beta = jax.random.normal(k4, (Cout,), jnp.float32) * 0.1
    running_mean = jnp.zeros((Cout,), jnp.float32)   # fresh BatchNorm2d init
    running_var = jnp.ones((Cout,), jnp.float32)

    # --- case 1: k=3, s=1 -> fused in-kernel im2col path, f32 operands ---
    out = jax.block_until_ready(conv_bn_silu(
        x, weight, gamma, beta, running_mean, running_var,
        k=ksz, s=1, compute_dtype=jnp.float32))
    ref = _reference(x, weight, gamma, beta, running_mean, running_var, k=ksz, s=1)
    assert out.shape == ref.shape == (N, Cout, H, W)
    assert jnp.allclose(out, ref, atol=1e-3, rtol=1e-3)

    # --- case 2: stride 2 -> wrapper-im2col GEMM path (no K padding), f32 ---
    out2 = jax.block_until_ready(conv_bn_silu(
        x, weight, gamma, beta, running_mean, running_var,
        k=ksz, s=2, compute_dtype=jnp.float32))
    ref2 = _reference(x, weight, gamma, beta, running_mean, running_var, k=ksz, s=2)
    assert out2.shape == ref2.shape == (N, Cout, H // 2, W // 2)
    assert jnp.allclose(out2, ref2, atol=1e-3, rtol=1e-3)

    # --- case 3: default bf16 MXU operands (f32 accumulation); the looser
    #     tolerance is bf16 *operand* rounding, not accumulation error ---
    out3 = jax.block_until_ready(conv_bn_silu(
        x, weight, gamma, beta, running_mean, running_var, k=ksz, s=1))
    assert jnp.allclose(out3, ref, atol=5e-2, rtol=5e-2)

    # --- case 4: dilation 2 on the fused path, f32 operands ---
    out4 = jax.block_until_ready(conv_bn_silu(
        x, weight, gamma, beta, running_mean, running_var,
        k=ksz, s=1, d=2, compute_dtype=jnp.float32))
    ref4 = _reference(x, weight, gamma, beta, running_mean, running_var,
                      k=ksz, s=1, d=2)
    assert out4.shape == ref4.shape == (N, Cout, H, W)
    assert jnp.allclose(out4, ref4, atol=1e-3, rtol=1e-3)

    print("KERNEL_OK")
</pallas_src>

<mosaic_0001>
module attributes {stable_mosaic.version = 11 : i64} {
  func.func @_fused_conv_kernel(%arg0: i32, %arg1: i32, %arg2: i32, %arg3: memref<1x18x18x4xf32, #tpu.memory_space<vmem>>, %arg4: memref<36x8xf32, #tpu.memory_space<vmem>>, %arg5: memref<1x8xf32, #tpu.memory_space<vmem>>, %arg6: memref<1x1x256x8xf32, #tpu.memory_space<vmem>>) attributes {dimension_semantics = [#tpu.dimension_semantics<parallel>, #tpu.dimension_semantics<parallel>, #tpu.dimension_semantics<parallel>], iteration_bounds = array<i64: 2, 1, 1>, scalar_prefetch = 0 : i64, scratch_operands = 0 : i64, tpu.core_type = #tpu.core_type<tc>, window_params = [{transform_indices = @transform_0, window_bounds = array<i64: 1, 18, 18, 4>}, {transform_indices = @transform_1, window_bounds = array<i64: 36, 8>}, {transform_indices = @transform_2, window_bounds = array<i64: 1, 8>}, {transform_indices = @transform_3, window_bounds = array<i64: 1, 1, 256, 8>}]} {
    %c16_i32 = arith.constant 16 : i32
    %0 = arith.muli %arg2, %c16_i32 : i32
    %c0_i32 = arith.constant 0 : i32
    %1 = arith.addi %0, %c0_i32 : i32
    %c0 = arith.constant 0 : index
    %2 = arith.index_cast %1 : i32 to index
    %c0_0 = arith.constant 0 : index
    %c0_1 = arith.constant 0 : index
    %3 = vector.load %arg3[%c0, %2, %c0_0, %c0_1] : memref<1x18x18x4xf32, #tpu.memory_space<vmem>>, vector<1x16x16x4xf32>
    %4 = vector.shape_cast %3 : vector<1x16x16x4xf32> to vector<16x16x4xf32>
    %c0_i32_2 = arith.constant 0 : i32
    %5 = arith.addi %0, %c0_i32_2 : i32
    %c0_3 = arith.constant 0 : index
    %6 = arith.index_cast %5 : i32 to index
    %c1 = arith.constant 1 : index
    %c0_4 = arith.constant 0 : index
    %7 = vector.load %arg3[%c0_3, %6, %c1, %c0_4] : memref<1x18x18x4xf32, #tpu.memory_space<vmem>>, vector<1x16x16x4xf32>
    %8 = vector.shape_cast %7 : vector<1x16x16x4xf32> to vector<16x16x4xf32>
    %c0_i32_5 = arith.constant 0 : i32
    %9 = arith.addi %0, %c0_i32_5 : i32
    %c0_6 = arith.constant 0 : index
    %10 = arith.index_cast %9 : i32 to index
    %c2 = arith.constant 2 : index
    %c0_7 = arith.constant 0 : index
    %11 = vector.load %arg3[%c0_6, %10, %c2, %c0_7] : memref<1x18x18x4xf32, #tpu.memory_space<vmem>>, vector<1x16x16x4xf32>
    %12 = vector.shape_cast %11 : vector<1x16x16x4xf32> to vector<16x16x4xf32>
    %c1_i32 = arith.constant 1 : i32
    %13 = arith.addi %0, %c1_i32 : i32
    %c0_8 = arith.constant 0 : index
    %14 = arith.index_cast %13 : i32 to index
    %c0_9 = arith.constant 0 : index
    %c0_10 = arith.constant 0 : index
    %15 = vector.load %arg3[%c0_8, %14, %c0_9, %c0_10] : memref<1x18x18x4xf32, #tpu.memory_space<vmem>>, vector<1x16x16x4xf32>
    %16 = vector.shape_cast %15 : vector<1x16x16x4xf32> to vector<16x16x4xf32>
    %c1_i32_11 = arith.constant 1 : i32
    %17 = arith.addi %0, %c1_i32_11 : i32
    %c0_12 = arith.constant 0 : index
    %18 = arith.index_cast %17 : i32 to index
    %c1_13 = arith.constant 1 : index
    %c0_14 = arith.constant 0 : index
    %19 = vector.load %arg3[%c0_12, %18, %c1_13, %c0_14] : memref<1x18x18x4xf32, #tpu.memory_space<vmem>>, vector<1x16x16x4xf32>
    %20 = vector.shape_cast %19 : vector<1x16x16x4xf32> to vector<16x16x4xf32>
    %c1_i32_15 = arith.constant 1 : i32
    %21 = arith.addi %0, %c1_i32_15 : i32
    %c0_16 = arith.constant 0 : index
    %22 = arith.index_cast %21 : i32 to index
    %c2_17 = arith.constant 2 : index
    %c0_18 = arith.constant 0 : index
    %23 = vector.load %arg3[%c0_16, %22, %c2_17, %c0_18] : memref<1x18x18x4xf32, #tpu.memory_space<vmem>>, vector<1x16x16x4xf32>
    %24 = vector.shape_cast %23 : vector<1x16x16x4xf32> to vector<16x16x4xf32>
    %c2_i32 = arith.constant 2 : i32
    %25 = arith.addi %0, %c2_i32 : i32
    %c0_19 = arith.constant 0 : index
    %26 = arith.index_cast %25 : i32 to index
    %c0_20 = arith.constant 0 : index
    %c0_21 = arith.constant 0 : index
    %27 = vector.load %arg3[%c0_19, %26, %c0_20, %c0_21] : memref<1x18x18x4xf32, #tpu.memory_space<vmem>>, vector<1x16x16x4xf32>
    %28 = vector.shape_cast %27 : vector<1x16x16x4xf32> to vector<16x16x4xf32>
    %c2_i32_22 = arith.constant 2 : i32
    %29 = arith.addi %0, %c2_i32_22 : i32
    %c0_23 = arith.constant 0 : index
    %30 = arith.index_cast %29 : i32 to index
    %c1_24 = arith.constant 1 : index
    %c0_25 = arith.constant 0 : index
    %31 = vector.load %arg3[%c0_23, %30, %c1_24, %c0_25] : memref<1x18x18x4xf32, #tpu.memory_space<vmem>>, vector<1x16x16x4xf32>
    %32 = vector.shape_cast %31 : vector<1x16x16x4xf32> to vector<16x16x4xf32>
    %c2_i32_26 = arith.constant 2 : i32
    %33 = arith.addi %0, %c2_i32_26 : i32
    %c0_27 = arith.constant 0 : index
    %34 = arith.index_cast %33 : i32 to index
    %c2_28 = arith.constant 2 : index
    %c0_29 = arith.constant 0 : index
    %35 = vector.load %arg3[%c0_27, %34, %c2_28, %c0_29] : memref<1x18x18x4xf32, #tpu.memory_space<vmem>>, vector<1x16x16x4xf32>
    %36 = vector.shape_cast %35 : vector<1x16x16x4xf32> to vector<16x16x4xf32>
    %37 = tpu.concatenate %4, %8, %12, %16, %20, %24, %28, %32, %36 in 2 : vector<16x16x4xf32>, vector<16x16x4xf32>, vector<16x16x4xf32>, vector<16x16x4xf32>, vector<16x16x4xf32>, vector<16x16x4xf32>, vector<16x16x4xf32>, vector<16x16x4xf32>, vector<16x16x4xf32> -> vector<16x16x36xf32>
    %38 = vector.shape_cast %37 : vector<16x16x36xf32> to vector<256x36xf32>
    %c0_30 = arith.constant 0 : index
    %c0_31 = arith.constant 0 : index
    %39 = vector.load %arg4[%c0_30, %c0_31] : memref<36x8xf32, #tpu.memory_space<vmem>>, vector<36x8xf32>
    %cst = arith.constant dense<0.000000e+00> : vector<256x8xf32>
    %40 = tpu.matmul %38, %39, %cst {dimension_numbers = #tpu.dot_dimension_numbers<[1], [0], [0], [1], [0, 0, 1, 1], [], []>} : vector<256x36xf32>, vector<36x8xf32>, vector<256x8xf32> -> vector<256x8xf32>
    %c0_32 = arith.constant 0 : index
    %c0_33 = arith.constant 0 : index
    %41 = vector.load %arg5[%c0_32, %c0_33] : memref<1x8xf32, #tpu.memory_space<vmem>>, vector<1x8xf32>
    %42 = vector.broadcast %41 : vector<1x8xf32> to vector<256x8xf32>
    %43 = arith.addf %40, %42 : vector<256x8xf32>
    %cst_34 = arith.constant 0.000000e+00 : f32
    %44 = vector.broadcast %cst_34 : f32 to vector<256x8xf32>
    %45 = arith.subf %44, %43 : vector<256x8xf32>
    %46 = math.exp %45 : vector<256x8xf32>
    %cst_35 = arith.constant 1.000000e+00 : f32
    %47 = vector.broadcast %cst_35 : f32 to vector<256x8xf32>
    %48 = arith.addf %47, %46 : vector<256x8xf32>
    %49 = tpu.reciprocal %48 : vector<256x8xf32> -> vector<256x8xf32>
    %50 = arith.mulf %43, %49 : vector<256x8xf32>
    %c0_36 = arith.constant 0 : index
    %c0_37 = arith.constant 0 : index
    %c0_38 = arith.constant 0 : index
    %c0_39 = arith.constant 0 : index
    %51 = vector.load %arg6[%c0_36, %c0_37, %c0_38, %c0_39] : memref<1x1x256x8xf32, #tpu.memory_space<vmem>>, vector<1x1x256x8xf32>
    %52 = vector.shape_cast %51 : vector<1x1x256x8xf32> to vector<256x8xf32>
    %53 = vector.shape_cast %50 : vector<256x8xf32> to vector<1x1x256x8xf32>
    tpu.vector_store %arg6[%c0_36, %c0_37, %c0_38, %c0_39], %53 {strides = array<i32>} : memref<1x1x256x8xf32, #tpu.memory_space<vmem>>, vector<1x1x256x8xf32>,
    return
  }
  func.func @transform_0(%arg0: i32, %arg1: i32, %arg2: i32) -> (i32, i32, i32, i32) {
    %c0_i32 = arith.constant 0 : i32
    %c0_i32_0 = arith.constant 0 : i32
    %c0_i32_1 = arith.constant 0 : i32
    %c0_i32_2 = arith.constant 0 : i32
    return %arg0, %c0_i32, %c0_i32_0, %c0_i32_1 : i32, i32, i32, i32
  }
  func.func @transform_1(%arg0: i32, %arg1: i32, %arg2: i32) -> (i32, i32) {
    %c0_i32 = arith.constant 0 : i32
    %c0_i32_0 = arith.constant 0 : i32
    return %c0_i32, %arg1 : i32, i32
  }
  func.func @transform_2(%arg0: i32, %arg1: i32, %arg2: i32) -> (i32, i32) {
    %c0_i32 = arith.constant 0 : i32
    %c0_i32_0 = arith.constant 0 : i32
    return %c0_i32, %arg1 : i32, i32
  }
  func.func @transform_3(%arg0: i32, %arg1: i32, %arg2: i32) -> (i32, i32, i32, i32) {
    %c0_i32 = arith.constant 0 : i32
    %c0_i32_0 = arith.constant 0 : i32
    return %arg0, %arg2, %c0_i32, %arg1 : i32, i32, i32, i32
  }
}

</mosaic_0001>

<llo_original>
// kernel: tpu_custom_call.1
$region0: #{tpu_custom_call.1}
  #allocation0 [shape = 'u32[]', space=smem, size = 0x4, offset = 0x4, fixed_abs, tag = 'smem constant byte address 0x4 - core index']
  #allocation1 [shape = 'u32[144,128]{1,0:T(1,128)}', space=vmem, size = 0x12000, scoped, tag = 'internal scratch']
  %s0 = inlined_call_operand.vmem [shape: f32[2,18,18,4], index: 0, kind: input, shape index: {}]
  %s1 = inlined_call_operand.vmem [shape: f32[36,8], index: 1, kind: input, shape index: {}]
  %s2 = inlined_call_operand.vmem [shape: f32[1,8], index: 2, kind: input, shape index: {}]
  %s3 = inlined_call_operand.vmem [shape: f32[2,1,256,8], index: 3, kind: output, shape index: {}]
  %s4 = sld [smem:[#allocation0]]
  $region45: #{tpu_custom_call.1} parent=0
    _
  %s6 = ssub.s32 1, %s4
  %s7 = scalar_select 0, %s6, %s4
  loop: start=0, step=1, limit=4
  $region2: #{tpu_custom_call.1} parent=0 // loop_pre_header
    _
  $region3: #{tpu_custom_call.1} parent=0 // loop_header
    %s9 = sphi 0, %s13
    %p10 = scmp.ge.s32.totalorder %s9, 4
    %s16 = sphi 0, %s35
    %s17 = sphi 0, %s31
    %s18 = sphi 0, %s27
    %s19 = sphi 0, %s16
    %s20 = sphi 0, %s17
    %s21 = sphi 0, %s18
    %s22 = sphi 0, %s19
    %s23 = sphi 0, %s20
    %s24 = sphi 0, %s21
    %s38 = sphi 0, %s40
    %s41 = sphi 0, %s38
    %s42 = sphi 0, %s41
    %s58 = sphi 0, %s42
    %s64 = sphi 0, %s66
    %s67 = sphi 0, %s64
    %s68 = sphi 0, %s67
    %s84 = sphi 0, %s68
    %s90 = sphi 0, %s92
    %s93 = sphi 0, %s90
    %s94 = sphi 0, %s93
    %s110 = sphi 0, %s94
    %s120 = sphi 0, %s122
    %s123 = sphi 0, %s120
    %s124 = sphi 0, %s123
    %s140 = sphi 0, %s124
  $region4: #{tpu_custom_call.1} parent=0 // loop_header_branch
    %12 = sbr.rel (%p10) target = $region8
  $region5: #{tpu_custom_call.1} parent=0 // loop_body
    %s14 = ssub.s32 %s9, 1
    %s15 = ssub.s32 %s9, 2
    %s25 = sadd.s32 1, %s18
    %p26 = scmp.ge.s32.totalorder %s25, 1
    %s27 = scalar_select %p26, 0, %s25
    %s28 = sadd.s32 1, %s17
    %s29 = scalar_select %p26, %s28, %s17
    %p30 = scmp.ge.s32.totalorder %s29, 1
    %s31 = scalar_select %p30, 0, %s29
    %s32 = sadd.s32 1, %s16
    %s33 = scalar_select %p30, %s32, %s16
    %p34 = scmp.ge.s32.totalorder %s33, 2
    %s35 = scalar_select %p34, 0, %s33
    %s36 = ssub.s32 %s16, %s35
    %p37 = scmp.eq.s32.totalorder %s36, 0
    %s39 = sadd.s32 %s38, 1
    %s40 = scalar_select %p37, %s38, %s39
    %p43 = pneg %p37
    %p44 = scmp.eq.s32.totalorder %s9, 1
    %p45 = por %p43, %p44
    %p46 = scmp.ne.s32.totalorder %s38, %s41
    %p47 = scmp.eq.s32.totalorder %s9, 0
    %p48 = por %p46, %p47
    %p49 = scmp.ne.s32.totalorder %s38, %s41
    %p50 = scmp.eq.s32.totalorder %s14, 1
    %p51 = por %p49, %p50
    %p52 = scmp.ne.s32.totalorder %s41, %s42
    %p53 = scmp.eq.s32.totalorder %s14, 0
    %p54 = por %p52, %p53
    %p55 = scmp.ne.s32.totalorder %s41, %s42
    %p56 = scmp.eq.s32.totalorder %s15, 1
    %p57 = por %p55, %p56
    %p59 = scmp.ne.s32.totalorder %s42, %s58
    %p60 = scmp.eq.s32.totalorder %s15, 0
    %p61 = por %p59, %p60
    %s62 = ssub.s32 %s17, %s31
    %p63 = scmp.eq.s32.totalorder %s62, 0
    %s65 = sadd.s32 %s64, 1
    %s66 = scalar_select %p63, %s64, %s65
    %p69 = pneg %p63
    %p70 = scmp.eq.s32.totalorder %s9, 1
    %p71 = por %p69, %p70
    %p72 = scmp.ne.s32.totalorder %s64, %s67
    %p73 = scmp.eq.s32.totalorder %s9, 0
    %p74 = por %p72, %p73
    %p75 = scmp.ne.s32.totalorder %s64, %s67
    %p76 = scmp.eq.s32.totalorder %s14, 1
    %p77 = por %p75, %p76
    %p78 = scmp.ne.s32.totalorder %s67, %s68
    %p79 = scmp.eq.s32.totalorder %s14, 0
    %p80 = por %p78, %p79
    %p81 = scmp.ne.s32.totalorder %s67, %s68
    %p82 = scmp.eq.s32.totalorder %s15, 1
    %p83 = por %p81, %p82
    %p85 = scmp.ne.s32.totalorder %s68, %s84
    %p86 = scmp.eq.s32.totalorder %s15, 0
    %p87 = por %p85, %p86
    %s88 = ssub.s32 %s17, %s31
    %p89 = scmp.eq.s32.totalorder %s88, 0
    %s91 = sadd.s32 %s90, 1
    %s92 = scalar_select %p89, %s90, %s91
    %p95 = pneg %p89
    %p96 = scmp.eq.s32.totalorder %s9, 1
    %p97 = por %p95, %p96
    %p98 = scmp.ne.s32.totalorder %s90, %s93
    %p99 = scmp.eq.s32.totalorder %s9, 0
    %p100 = por %p98, %p99
    %p101 = scmp.ne.s32.totalorder %s90, %s93
    %p102 = scmp.eq.s32.totalorder %s14, 1
    %p103 = por %p101, %p102
    %p104 = scmp.ne.s32.totalorder %s93, %s94
    %p105 = scmp.eq.s32.totalorder %s14, 0
    %p106 = por %p104, %p105
    %p107 = scmp.ne.s32.totalorder %s93, %s94
    %p108 = scmp.eq.s32.totalorder %s15, 1
    %p109 = por %p107, %p108
    %p111 = scmp.ne.s32.totalorder %s94, %s110
    %p112 = scmp.eq.s32.totalorder %s15, 0
    %p113 = por %p111, %p112
    %s114 = ssub.s32 %s16, %s35
    %s115 = ssub.s32 %s18, %s27
    %s116 = sor.u32 %s114, %s115
    %s117 = ssub.s32 %s17, %s31
    %s118 = sor.u32 %s116, %s117
    %p119 = scmp.eq.s32.totalorder %s118, 0
    %s121 = sadd.s32 %s120, 1
    %s122 = scalar_select %p119, %s120, %s121
    %p125 = pneg %p119
    %p126 = scmp.eq.s32.totalorder %s9, 1
    %p127 = por %p125, %p126
    %p128 = scmp.ne.s32.totalorder %s120, %s123
    %p129 = scmp.eq.s32.totalorder %s9, 0
    %p130 = por %p128, %p129
    %p131 = scmp.ne.s32.totalorder %s120, %s123
    %p132 = scmp.eq.s32.totalorder %s14, 1
    %p133 = por %p131, %p132
    %p134 = scmp.ne.s32.totalorder %s123, %s124
    %p135 = scmp.eq.s32.totalorder %s14, 0
    %p136 = por %p134, %p135
    %p137 = scmp.ne.s32.totalorder %s123, %s124
    %p138 = scmp.eq.s32.totalorder %s15, 1
    %p139 = por %p137, %p138
    %p141 = scmp.ne.s32.totalorder %s124, %s140
    %p142 = scmp.eq.s32.totalorder %s15, 0
    %p143 = por %p141, %p142
    %p144 = scmp.le.s32.totalorder 1, %s9
    %p145 = scmp.lt.s32.totalorder %s9, 3
    %p146 = pnand %p144, %p145
    %p147 = pneg %p146
    // Predicated region
    $region9: #{tpu_custom_call.1} parent=5 // pred_check
      _
    $region10: #{tpu_custom_call.1} parent=5 // pred_check_branch
      %149 = sbr.rel (%p146) target = $region12
    $region11: #{tpu_custom_call.1} parent=5 // pred_region
      %s150 = ssub.s32 %s9, 1
      // Predicated region
      $region13: #{tpu_custom_call.1} parent=11 // pred_check
        %p151 = pneg %p80
      $region14: #{tpu_custom_call.1} parent=11 // pred_check_branch
        %153 = sbr.rel (%p151) target = $region16
      $region15: #{tpu_custom_call.1} parent=11 // pred_region
        %p154 = scmp.lt.s32.totalorder %s20, 0
        %s155 = scalar_select %p154, %s20, 0
        %s156 = smul.addr %s155, 8
        %s157 = scalar_lea.vmem %s1, %s156
      $region16: #{tpu_custom_call.1} parent=11 // pred_fallthru
        _
      // Predicated region
      $region17: #{tpu_custom_call.1} parent=11 // pred_check
        %p158 = pneg %p106
      $region18: #{tpu_custom_call.1} parent=11 // pred_check_branch
        %160 = sbr.rel (%p158) target = $region20
      $region19: #{tpu_custom_call.1} parent=11 // pred_region
        %p161 = scmp.lt.s32.totalorder %s20, 0
        %s162 = scalar_select %p161, %s20, 0
        %s163 = scalar_lea.vmem %s2, %s162
      $region20: #{tpu_custom_call.1} parent=11 // pred_fallthru
        _
    $region12: #{tpu_custom_call.1} parent=5 // pred_fallthru
      _
    %p164 = scmp.lt.s32.totalorder %s9, 2
    // Predicated region
    $region21: #{tpu_custom_call.1} parent=5 // pred_check
      %p165 = pneg %p164
    $region22: #{tpu_custom_call.1} parent=5 // pred_check_branch
      %167 = sbr.rel (%p165) target = $region24
    $region23: #{tpu_custom_call.1} parent=5 // pred_region
      // Predicated region
      $region25: #{tpu_custom_call.1} parent=23 // pred_check
        %p168 = pneg %p48
      $region26: #{tpu_custom_call.1} parent=23 // pred_check_branch
        %170 = sbr.rel (%p168) target = $region28
      $region27: #{tpu_custom_call.1} parent=23 // pred_region
        %p171 = scmp.lt.s32.totalorder %s16, 1
        %s172 = scalar_select %p171, %s16, 1
        %s173 = smul.addr %s172, 54
        %s174 = smul.addr %s173, 8
        %s175 = scalar_lea.vmem %s0, %s174
      $region28: #{tpu_custom_call.1} parent=23 // pred_fallthru
        _
    $region24: #{tpu_custom_call.1} parent=5 // pred_fallthru
      _
    %p176 = scmp.le.s32.totalorder 1, %s9
    %p177 = scmp.lt.s32.totalorder %s9, 3
    %p178 = pnand %p176, %p177
    %p179 = pneg %p178
    // Predicated region
    $region29: #{tpu_custom_call.1} parent=5 // pred_check
      _
    $region30: #{tpu_custom_call.1} parent=5 // pred_check_branch
      %181 = sbr.rel (%p178) target = $region32
    $region31: #{tpu_custom_call.1} parent=5 // pred_region
      %s182 = ssub.s32 %s9, 1
      %p183 = scmp.lt.s32.totalorder %s19, 1
      %s184 = scalar_select %p183, %s19, 1
      %s185 = smul.addr %s184, 54
      %s186 = smul.addr %s185, 8
      %s187 = scalar_lea.vmem %s0, %s186
      %p188 = pneg %p54
      %p189 = pneg %p51
      %p190 = scmp.lt.s32.totalorder %s20, 0
      %s191 = scalar_select %p190, %s20, 0
      %s192 = smul.addr %s191, 8
      %s193 = scalar_lea.vmem %s1, %s192
      %p194 = pneg %p80
      %p195 = pneg %p77
      %p196 = scmp.lt.s32.totalorder %s20, 0
      %s197 = scalar_select %p196, %s20, 0
      %s198 = scalar_lea.vmem %s2, %s197
      %p199 = pneg %p106
      %p200 = pneg %p103
      %p201 = pneg %p136
      %p202 = pneg %p133
      %p203 = scmp.lt.s32.totalorder %s19, 1
      %s204 = scalar_select %p203, %s19, 1
      %p205 = scmp.lt.s32.totalorder %s21, 0
      %s206 = scalar_select %p205, %s21, 0
      %p207 = scmp.lt.s32.totalorder %s20, 0
      %s208 = scalar_select %p207, %s20, 0
      %s209 = smul.addr %s206, 32
      %s210 = sadd.s32 %s208, %s209
      %s211 = smul.addr %s204, 32
      %s212 = sadd.s32 %s210, %s211
      %s213 = smul.addr %s212, 8
      %s214 = scalar_lea.vmem %s3, %s213
      %p215 = scmp.lt.s32.totalorder %s19, 1
      %s216 = scalar_select %p215, %s19, 1
      %s217 = smul.addr %s216, 54
      %s218 = smul.addr %s217, 8
      %s219 = scalar_lea.vmem %s0, %s218
      %p220 = scmp.lt.s32.totalorder %s20, 0
      %s221 = scalar_select %p220, %s20, 0
      %s222 = smul.addr %s221, 8
      %s223 = scalar_lea.vmem %s1, %s222
      %p224 = scmp.lt.s32.totalorder %s20, 0
      %s225 = scalar_select %p224, %s20, 0
      %s226 = scalar_lea.vmem %s2, %s225
      %p227 = scmp.lt.s32.totalorder %s19, 1
      %s228 = scalar_select %p227, %s19, 1
      %p229 = scmp.lt.s32.totalorder %s21, 0
      %s230 = scalar_select %p229, %s21, 0
      %p231 = scmp.lt.s32.totalorder %s20, 0
      %s232 = scalar_select %p231, %s20, 0
      %s233 = smul.addr %s230, 32
      %s234 = sadd.s32 %s232, %s233
      %s235 = smul.addr %s228, 32
      %s236 = sadd.s32 %s234, %s235
      %s237 = smul.addr %s236, 8
      %s238 = scalar_lea.vmem %s3, %s237
      %s239 = smul.u32 %s21, 16
      %s240 = smul.u32 %s239, 24
      %s241 = scalar_lea.vmem %s219, %s240
      %v242 = vld [vmem:[%s241] sm:$0xff]
      %v243 = vld [vmem:[%s241 + $0x8] sm:$0xff]
      %v244 = vld [vmem:[%s241 + $0x18] sm:$0xff]
      %v245 = vld [vmem:[%s241 + $0x20] sm:$0xff]
      %v246 = vld [vmem:[%s241 + $0x30] sm:$0xff]
      %v247 = vld [vmem:[%s241 + $0x38] sm:$0xff]
      %v248 = vld [vmem:[%s241 + $0x48] sm:$0xff]
      %v249 = vld [vmem:[%s241 + $0x50] sm:$0xff]
      %v250 = vld [vmem:[%s241 + $0x60] sm:$0xff]
      %v251 = vld [vmem:[%s241 + $0x68] sm:$0xff]
      %v252 = vld [vmem:[%s241 + $0x78] sm:$0xff]
      %v253 = vld [vmem:[%s241 + $0x80] sm:$0xff]
      %v254 = vld [vmem:[%s241 + $0x90] sm:$0xff]
      %v255 = vld [vmem:[%s241 + $0x98] sm:$0xff]
      %v256 = vld [vmem:[%s241 + $0xa8] sm:$0xff]
      %v257 = vld [vmem:[%s241 + $0xb0] sm:$0xff]
      %v258 = vld [vmem:[%s241 + $0xc0] sm:$0xff]
      %v259 = vld [vmem:[%s241 + $0xc8] sm:$0xff]
      %v260 = vld [vmem:[%s241 + $0xd8] sm:$0xff]
      %v261 = vld [vmem:[%s241 + $0xe0] sm:$0xff]
      %v262 = vld [vmem:[%s241 + $0xf0] sm:$0xff]
      %v263 = vld [vmem:[%s241 + $0xf8] sm:$0xff]
      %v264 = vld [vmem:[%s241 + $0x108] sm:$0xff]
      %v265 = vld [vmem:[%s241 + $0x110] sm:$0xff]
      %v266 = vld [vmem:[%s241 + $0x120] sm:$0xff]
      %v267 = vld [vmem:[%s241 + $0x128] sm:$0xff]
      %v268 = vld [vmem:[%s241 + $0x138] sm:$0xff]
      %v269 = vld [vmem:[%s241 + $0x140] sm:$0xff]
      %v270 = vld [vmem:[%s241 + $0x150] sm:$0xff]
      %v271 = vld [vmem:[%s241 + $0x158] sm:$0xff]
      %v272 = vld [vmem:[%s241 + $0x168] sm:$0xff]
      %v273 = vld [vmem:[%s241 + $0x170] sm:$0xff]
      %v274 = vld [vmem:[%s241 + $0x1] sm:$0xff]
      %v275 = vld [vmem:[%s241 + $0x9] sm:$0xff]
      %v276 = vld [vmem:[%s241 + $0x19] sm:$0xff]
      %v277 = vld [vmem:[%s241 + $0x21] sm:$0xff]
      %v278 = vld [vmem:[%s241 + $0x31] sm:$0xff]
      %v279 = vld [vmem:[%s241 + $0x39] sm:$0xff]
      %v280 = vld [vmem:[%s241 + $0x49] sm:$0xff]
      %v281 = vld [vmem:[%s241 + $0x51] sm:$0xff]
      %v282 = vld [vmem:[%s241 + $0x61] sm:$0xff]
      %v283 = vld [vmem:[%s241 + $0x69] sm:$0xff]
      %v284 = vld [vmem:[%s241 + $0x79] sm:$0xff]
      %v285 = vld [vmem:[%s241 + $0x81] sm:$0xff]
      %v286 = vld [vmem:[%s241 + $0x91] sm:$0xff]
      %v287 = vld [vmem:[%s241 + $0x99] sm:$0xff]
      %v288 = vld [vmem:[%s241 + $0xa9] sm:$0xff]
      %v289 = vld [vmem:[%s241 + $0xb1] sm:$0xff]
      %v290 = vld [vmem:[%s241 + $0xc1] sm:$0xff]
      %v291 = vld [vmem:[%s241 + $0xc9] sm:$0xff]
      %v292 = vld [vmem:[%s241 + $0xd9] sm:$0xff]
      %v293 = vld [vmem:[%s241 + $0xe1] sm:$0xff]
      %v294 = vld [vmem:[%s241 + $0xf1] sm:$0xff]
      %v295 = vld [vmem:[%s241 + $0xf9] sm:$0xff]
      %v296 = vld [vmem:[%s241 + $0x109] sm:$0xff]
      %v297 = vld [vmem:[%s241 + $0x111] sm:$0xff]
      %v298 = vld [vmem:[%s241 + $0x121] sm:$0xff]
      %v299 = vld [vmem:[%s241 + $0x129] sm:$0xff]
      %v300 = vld [vmem:[%s241 + $0x139] sm:$0xff]
      %v301 = vld [vmem:[%s241 + $0x141] sm:$0xff]
      %v302 = vld [vmem:[%s241 + $0x151] sm:$0xff]
      %v303 = vld [vmem:[%s241 + $0x159] sm:$0xff]
      %v304 = vld [vmem:[%s241 + $0x169] sm:$0xff]
      %v305 = vld [vmem:[%s241 + $0x171] sm:$0xff]
      %v306 = vld [vmem:[%s241 + $0x2] sm:$0xff]
      %v307 = vld [vmem:[%s241 + $0xa] sm:$0xff]
      %v308 = vld [vmem:[%s241 + $0x1a] sm:$0xff]
      %v309 = vld [vmem:[%s241 + $0x22] sm:$0xff]
      %v310 = vld [vmem:[%s241 + $0x32] sm:$0xff]
      %v311 = vld [vmem:[%s241 + $0x3a] sm:$0xff]
      %v312 = vld [vmem:[%s241 + $0x4a] sm:$0xff]
      %v313 = vld [vmem:[%s241 + $0x52] sm:$0xff]
      %v314 = vld [vmem:[%s241 + $0x62] sm:$0xff]
      %v315 = vld [vmem:[%s241 + $0x6a] sm:$0xff]
      %v316 = vld [vmem:[%s241 + $0x7a] sm:$0xff]
      %v317 = vld [vmem:[%s241 + $0x82] sm:$0xff]
      %v318 = vld [vmem:[%s241 + $0x92] sm:$0xff]
      %v319 = vld [vmem:[%s241 + $0x9a] sm:$0xff]
      %v320 = vld [vmem:[%s241 + $0xaa] sm:$0xff]
      %v321 = vld [vmem:[%s241 + $0xb2] sm:$0xff]
      %v322 = vld [vmem:[%s241 + $0xc2] sm:$0xff]
      %v323 = vld [vmem:[%s241 + $0xca] sm:$0xff]
      %v324 = vld [vmem:[%s241 + $0xda] sm:$0xff]
      %v325 = vld [vmem:[%s241 + $0xe2] sm:$0xff]
      %v326 = vld [vmem:[%s241 + $0xf2] sm:$0xff]
      %v327 = vld [vmem:[%s241 + $0xfa] sm:$0xff]
      %v328 = vld [vmem:[%s241 + $0x10a] sm:$0xff]
      %v329 = vld [vmem:[%s241 + $0x112] sm:$0xff]
      %v330 = vld [vmem:[%s241 + $0x122] sm:$0xff]
      %v331 = vld [vmem:[%s241 + $0x12a] sm:$0xff]
      %v332 = vld [vmem:[%s241 + $0x13a] sm:$0xff]
      %v333 = vld [vmem:[%s241 + $0x142] sm:$0xff]
      %v334 = vld [vmem:[%s241 + $0x152] sm:$0xff]
      %v335 = vld [vmem:[%s241 + $0x15a] sm:$0xff]
      %v336 = vld [vmem:[%s241 + $0x16a] sm:$0xff]
      %v337 = vld [vmem:[%s241 + $0x172] sm:$0xff]
      %s338 = sadd.s32 %s239, 1
      %s339 = smul.u32 %s338, 24
      %s340 = scalar_lea.vmem %s219, %s339
      %v341 = vld [vmem:[%s340] sm:$0xff]
      %v342 = vld [vmem:[%s340 + $0x8] sm:$0xff]
      %v343 = vld [vmem:[%s340 + $0x18] sm:$0xff]
      %v344 = vld [vmem:[%s340 + $0x20] sm:$0xff]
      %v345 = vld [vmem:[%s340 + $0x30] sm:$0xff]
      %v346 = vld [vmem:[%s340 + $0x38] sm:$0xff]
      %v347 = vld [vmem:[%s340 + $0x48] sm:$0xff]
      %v348 = vld [vmem:[%s340 + $0x50] sm:$0xff]
      %v349 = vld [vmem:[%s340 + $0x60] sm:$0xff]
      %v350 = vld [vmem:[%s340 + $0x68] sm:$0xff]
      %v351 = vld [vmem:[%s340 + $0x78] sm:$0xff]
      %v352 = vld [vmem:[%s340 + $0x80] sm:$0xff]
      %v353 = vld [vmem:[%s340 + $0x90] sm:$0xff]
      %v354 = vld [vmem:[%s340 + $0x98] sm:$0xff]
      %v355 = vld [vmem:[%s340 + $0xa8] sm:$0xff]
      %v356 = vld [vmem:[%s340 + $0xb0] sm:$0xff]
      %v357 = vld [vmem:[%s340 + $0xc0] sm:$0xff]
      %v358 = vld [vmem:[%s340 + $0xc8] sm:$0xff]
      %v359 = vld [vmem:[%s340 + $0xd8] sm:$0xff]
      %v360 = vld [vmem:[%s340 + $0xe0] sm:$0xff]
      %v361 = vld [vmem:[%s340 + $0xf0] sm:$0xff]
      %v362 = vld [vmem:[%s340 + $0xf8] sm:$0xff]
      %v363 = vld [vmem:[%s340 + $0x108] sm:$0xff]
      %v364 = vld [vmem:[%s340 + $0x110] sm:$0xff]
      %v365 = vld [vmem:[%s340 + $0x120] sm:$0xff]
      %v366 = vld [vmem:[%s340 + $0x128] sm:$0xff]
      %v367 = vld [vmem:[%s340 + $0x138] sm:$0xff]
      %v368 = vld [vmem:[%s340 + $0x140] sm:$0xff]
      %v369 = vld [vmem:[%s340 + $0x150] sm:$0xff]
      %v370 = vld [vmem:[%s340 + $0x158] sm:$0xff]
      %v371 = vld [vmem:[%s340 + $0x168] sm:$0xff]
      %v372 = vld [vmem:[%s340 + $0x170] sm:$0xff]
      %v373 = vld [vmem:[%s340 + $0x1] sm:$0xff]
      %v374 = vld [vmem:[%s340 + $0x9] sm:$0xff]
      %v375 = vld [vmem:[%s340 + $0x19] sm:$0xff]
      %v376 = vld [vmem:[%s340 + $0x21] sm:$0xff]
      %v377 = vld [vmem:[%s340 + $0x31] sm:$0xff]
      %v378 = vld [vmem:[%s340 + $0x39] sm:$0xff]
      %v379 = vld [vmem:[%s340 + $0x49] sm:$0xff]
      %v380 = vld [vmem:[%s340 + $0x51] sm:$0xff]
      %v381 = vld [vmem:[%s340 + $0x61] sm:$0xff]
      %v382 = vld [vmem:[%s340 + $0x69] sm:$0xff]
      %v383 = vld [vmem:[%s340 + $0x79] sm:$0xff]
      %v384 = vld [vmem:[%s340 + $0x81] sm:$0xff]
      %v385 = vld [vmem:[%s340 + $0x91] sm:$0xff]
      %v386 = vld [vmem:[%s340 + $0x99] sm:$0xff]
      %v387 = vld [vmem:[%s340 + $0xa9] sm:$0xff]
      %v388 = vld [vmem:[%s340 + $0xb1] sm:$0xff]
      %v389 = vld [vmem:[%s340 + $0xc1] sm:$0xff]
      %v390 = vld [vmem:[%s340 + $0xc9] sm:$0xff]
      %v391 = vld [vmem:[%s340 + $0xd9] sm:$0xff]
      %v392 = vld [vmem:[%s340 + $0xe1] sm:$0xff]
      %v393 = vld [vmem:[%s340 + $0xf1] sm:$0xff]
      %v394 = vld [vmem:[%s340 + $0xf9] sm:$0xff]
      %v395 = vld [vmem:[%s340 + $0x109] sm:$0xff]
      %v396 = vld [vmem:[%s340 + $0x111] sm:$0xff]
      %v397 = vld [vmem:[%s340 + $0x121] sm:$0xff]
      %v398 = vld [vmem:[%s340 + $0x129] sm:$0xff]
      %v399 = vld [vmem:[%s340 + $0x139] sm:$0xff]
      %v400 = vld [vmem:[%s340 + $0x141] sm:$0xff]
      %v401 = vld [vmem:[%s340 + $0x151] sm:$0xff]
      %v402 = vld [vmem:[%s340 + $0x159] sm:$0xff]
      %v403 = vld [vmem:[%s340 + $0x169] sm:$0xff]
      %v404 = vld [vmem:[%s340 + $0x171] sm:$0xff]
      %v405 = vld [vmem:[%s340 + $0x2] sm:$0xff]
      %v406 = vld [vmem:[%s340 + $0xa] sm:$0xff]
      %v407 = vld [vmem:[%s340 + $0x1a] sm:$0xff]
      %v408 = vld [vmem:[%s340 + $0x22] sm:$0xff]
      %v409 = vld [vmem:[%s340 + $0x32] sm:$0xff]
      %v410 = vld [vmem:[%s340 + $0x3a] sm:$0xff]
      %v411 = vld [vmem:[%s340 + $0x4a] sm:$0xff]
      %v412 = vld [vmem:[%s340 + $0x52] sm:$0xff]
      %v413 = vld [vmem:[%s340 + $0x62] sm:$0xff]
      %v414 = vld [vmem:[%s340 + $0x6a] sm:$0xff]
      %v415 = vld [vmem:[%s340 + $0x7a] sm:$0xff]
      %v416 = vld [vmem:[%s340 + $0x82] sm:$0xff]
      %v417 = vld [vmem:[%s340 + $0x92] sm:$0xff]
      %v418 = vld [vmem:[%s340 + $0x9a] sm:$0xff]
      %v419 = vld [vmem:[%s340 + $0xaa] sm:$0xff]
      %v420 = vld [vmem:[%s340 + $0xb2] sm:$0xff]
      %v421 = vld [vmem:[%s340 + $0xc2] sm:$0xff]
      %v422 = vld [vmem:[%s340 + $0xca] sm:$0xff]
      %v423 = vld [vmem:[%s340 + $0xda] sm:$0xff]
      %v424 = vld [vmem:[%s340 + $0xe2] sm:$0xff]
      %v425 = vld [vmem:[%s340 + $0xf2] sm:$0xff]
      %v426 = vld [vmem:[%s340 + $0xfa] sm:$0xff]
      %v427 = vld [vmem:[%s340 + $0x10a] sm:$0xff]
      %v428 = vld [vmem:[%s340 + $0x112] sm:$0xff]
      %v429 = vld [vmem:[%s340 + $0x122] sm:$0xff]
      %v430 = vld [vmem:[%s340 + $0x12a] sm:$0xff]
      %v431 = vld [vmem:[%s340 + $0x13a] sm:$0xff]
      %v432 = vld [vmem:[%s340 + $0x142] sm:$0xff]
      %v433 = vld [vmem:[%s340 + $0x152] sm:$0xff]
      %v434 = vld [vmem:[%s340 + $0x15a] sm:$0xff]
      %v435 = vld [vmem:[%s340 + $0x16a] sm:$0xff]
      %v436 = vld [vmem:[%s340 + $0x172] sm:$0xff]
      %s437 = sadd.s32 %s239, 2
      %s438 = smul.u32 %s437, 24
      %s439 = scalar_lea.vmem %s219, %s438
      %v440 = vld [vmem:[%s439] sm:$0xff]
      %v441 = vld [vmem:[%s439 + $0x8] sm:$0xff]
      %v442 = vld [vmem:[%s439 + $0x18] sm:$0xff]
      %v443 = vld [vmem:[%s439 + $0x20] sm:$0xff]
      %v444 = vld [vmem:[%s439 + $0x30] sm:$0xff]
      %v445 = vld [vmem:[%s439 + $0x38] sm:$0xff]
      %v446 = vld [vmem:[%s439 + $0x48] sm:$0xff]
      %v447 = vld [vmem:[%s439 + $0x50] sm:$0xff]
      %v448 = vld [vmem:[%s439 + $0x60] sm:$0xff]
      %v449 = vld [vmem:[%s439 + $0x68] sm:$0xff]
      %v450 = vld [vmem:[%s439 + $0x78] sm:$0xff]
      %v451 = vld [vmem:[%s439 + $0x80] sm:$0xff]
      %v452 = vld [vmem:[%s439 + $0x90] sm:$0xff]
      %v453 = vld [vmem:[%s439 + $0x98] sm:$0xff]
      %v454 = vld [vmem:[%s439 + $0xa8] sm:$0xff]
      %v455 = vld [vmem:[%s439 + $0xb0] sm:$0xff]
      %v456 = vld [vmem:[%s439 + $0xc0] sm:$0xff]
      %v457 = vld [vmem:[%s439 + $0xc8] sm:$0xff]
      %v458 = vld [vmem:[%s439 + $0xd8] sm:$0xff]
      %v459 = vld [vmem:[%s439 + $0xe0] sm:$0xff]
      %v460 = vld [vmem:[%s439 + $0xf0] sm:$0xff]
      %v461 = vld [vmem:[%s439 + $0xf8] sm:$0xff]
      %v462 = vld [vmem:[%s439 + $0x108] sm:$0xff]
      %v463 = vld [vmem:[%s439 + $0x110] sm:$0xff]
      %v464 = vld [vmem:[%s439 + $0x120] sm:$0xff]
      %v465 = vld [vmem:[%s439 + $0x128] sm:$0xff]
      %v466 = vld [vmem:[%s439 + $0x138] sm:$0xff]
      %v467 = vld [vmem:[%s439 + $0x140] sm:$0xff]
      %v468 = vld [vmem:[%s439 + $0x150] sm:$0xff]
      %v469 = vld [vmem:[%s439 + $0x158] sm:$0xff]
      %v470 = vld [vmem:[%s439 + $0x168] sm:$0xff]
      %v471 = vld [vmem:[%s439 + $0x170] sm:$0xff]
      %v472 = vld [vmem:[%s439 + $0x1] sm:$0xff]
      %v473 = vld [vmem:[%s439 + $0x9] sm:$0xff]
      %v474 = vld [vmem:[%s439 + $0x19] sm:$0xff]
      %v475 = vld [vmem:[%s439 + $0x21] sm:$0xff]
      %v476 = vld [vmem:[%s439 + $0x31] sm:$0xff]
      %v477 = vld [vmem:[%s439 + $0x39] sm:$0xff]
      %v478 = vld [vmem:[%s439 + $0x49] sm:$0xff]
      %v479 = vld [vmem:[%s439 + $0x51] sm:$0xff]
      %v480 = vld [vmem:[%s439 + $0x61] sm:$0xff]
      %v481 = vld [vmem:[%s439 + $0x69] sm:$0xff]
      %v482 = vld [vmem:[%s439 + $0x79] sm:$0xff]
      %v483 = vld [vmem:[%s439 + $0x81] sm:$0xff]
      %v484 = vld [vmem:[%s439 + $0x91] sm:$0xff]
      %v485 = vld [vmem:[%s439 + $0x99] sm:$0xff]
      %v486 = vld [vmem:[%s439 + $0xa9] sm:$0xff]
      %v487 = vld [vmem:[%s439 + $0xb1] sm:$0xff]
      %v488 = vld [vmem:[%s439 + $0xc1] sm:$0xff]
      %v489 = vld [vmem:[%s439 + $0xc9] sm:$0xff]
      %v490 = vld [vmem:[%s439 + $0xd9] sm:$0xff]
      %v491 = vld [vmem:[%s439 + $0xe1] sm:$0xff]
      %v492 = vld [vmem:[%s439 + $0xf1] sm:$0xff]
      %v493 = vld [vmem:[%s439 + $0xf9] sm:$0xff]
      %v494 = vld [vmem:[%s439 + $0x109] sm:$0xff]
      %v495 = vld [vmem:[%s439 + $0x111] sm:$0xff]
      %v496 = vld [vmem:[%s439 + $0x121] sm:$0xff]
      %v497 = vld [vmem:[%s439 + $0x129] sm:$0xff]
      %v498 = vld [vmem:[%s439 + $0x139] sm:$0xff]
      %v499 = vld [vmem:[%s439 + $0x141] sm:$0xff]
      %v500 = vld [vmem:[%s439 + $0x151] sm:$0xff]
      %v501 = vld [vmem:[%s439 + $0x159] sm:$0xff]
      %v502 = vld [vmem:[%s439 + $0x169] sm:$0xff]
      %v503 = vld [vmem:[%s439 + $0x171] sm:$0xff]
      %v504 = vld [vmem:[%s439 + $0x2] sm:$0xff]
      %v505 = vld [vmem:[%s439 + $0xa] sm:$0xff]
      %v506 = vld [vmem:[%s439 + $0x1a] sm:$0xff]
      %v507 = vld [vmem:[%s439 + $0x22] sm:$0xff]
      %v508 = vld [vmem:[%s439 + $0x32] sm:$0xff]
      %v509 = vld [vmem:[%s439 + $0x3a] sm:$0xff]
      %v510 = vld [vmem:[%s439 + $0x4a] sm:$0xff]
      %v511 = vld [vmem:[%s439 + $0x52] sm:$0xff]
      %v512 = vld [vmem:[%s439 + $0x62] sm:$0xff]
      %v513 = vld [vmem:[%s439 + $0x6a] sm:$0xff]
      %v514 = vld [vmem:[%s439 + $0x7a] sm:$0xff]
      %v515 = vld [vmem:[%s439 + $0x82] sm:$0xff]
      %v516 = vld [vmem:[%s439 + $0x92] sm:$0xff]
      %v517 = vld [vmem:[%s439 + $0x9a] sm:$0xff]
      %v518 = vld [vmem:[%s439 + $0xaa] sm:$0xff]
      %v519 = vld [vmem:[%s439 + $0xb2] sm:$0xff]
      %v520 = vld [vmem:[%s439 + $0xc2] sm:$0xff]
      %v521 = vld [vmem:[%s439 + $0xca] sm:$0xff]
      %v522 = vld [vmem:[%s439 + $0xda] sm:$0xff]
      %v523 = vld [vmem:[%s439 + $0xe2] sm:$0xff]
      %v524 = vld [vmem:[%s439 + $0xf2] sm:$0xff]
      %v525 = vld [vmem:[%s439 + $0xfa] sm:$0xff]
      %v526 = vld [vmem:[%s439 + $0x10a] sm:$0xff]
      %v527 = vld [vmem:[%s439 + $0x112] sm:$0xff]
      %v528 = vld [vmem:[%s439 + $0x122] sm:$0xff]
      %v529 = vld [vmem:[%s439 + $0x12a] sm:$0xff]
      %v530 = vld [vmem:[%s439 + $0x13a] sm:$0xff]
      %v531 = vld [vmem:[%s439 + $0x142] sm:$0xff]
      %v532 = vld [vmem:[%s439 + $0x152] sm:$0xff]
      %v533 = vld [vmem:[%s439 + $0x15a] sm:$0xff]
      %v534 = vld [vmem:[%s439 + $0x16a] sm:$0xff]
      %v535 = vld [vmem:[%s439 + $0x172] sm:$0xff]
      %568 = vrot.lane.b32.xlu0 %v274, 4
      %v569 = vpop.permute.xlu0 %568
      %570 = vrot.lane.b32.xlu0 %v275, 4
      %v571 = vpop.permute.xlu0 %570
      %572 = vrot.lane.b32.xlu0 %v276, 4
      %v573 = vpop.permute.xlu0 %572
      %574 = vrot.lane.b32.xlu0 %v277, 4
      %v575 = vpop.permute.xlu0 %574
      %576 = vrot.lane.b32.xlu0 %v278, 4
      %v577 = vpop.permute.xlu0 %576
      %578 = vrot.lane.b32.xlu0 %v279, 4
      %v579 = vpop.permute.xlu0 %578
      %580 = vrot.lane.b32.xlu0 %v280, 4
      %v581 = vpop.permute.xlu0 %580
      %582 = vrot.lane.b32.xlu0 %v281, 4
      %v583 = vpop.permute.xlu0 %582
      %584 = vrot.lane.b32.xlu0 %v282, 4
      %v585 = vpop.permute.xlu0 %584
      %586 = vrot.lane.b32.xlu0 %v283, 4
      %v587 = vpop.permute.xlu0 %586
      %588 = vrot.lane.b32.xlu0 %v284, 4
      %v589 = vpop.permute.xlu0 %588
      %590 = vrot.lane.b32.xlu0 %v285, 4
      %v591 = vpop.permute.xlu0 %590
      %592 = vrot.lane.b32.xlu0 %v286, 4
      %v593 = vpop.permute.xlu0 %592
      %594 = vrot.lane.b32.xlu0 %v287, 4
      %v595 = vpop.permute.xlu0 %594
      %596 = vrot.lane.b32.xlu0 %v288, 4
      %v597 = vpop.permute.xlu0 %596
      %598 = vrot.lane.b32.xlu0 %v289, 4
      %v599 = vpop.permute.xlu0 %598
      %600 = vrot.lane.b32.xlu0 %v290, 4
      %v601 = vpop.permute.xlu0 %600
      %602 = vrot.lane.b32.xlu0 %v291, 4
      %v603 = vpop.permute.xlu0 %602
      %604 = vrot.lane.b32.xlu0 %v292, 4
      %v605 = vpop.permute.xlu0 %604
      %606 = vrot.lane.b32.xlu0 %v293, 4
      %v607 = vpop.permute.xlu0 %606
      %608 = vrot.lane.b32.xlu0 %v294, 4
      %v609 = vpop.permute.xlu0 %608
      %610 = vrot.lane.b32.xlu0 %v295, 4
      %v611 = vpop.permute.xlu0 %610
      %612 = vrot.lane.b32.xlu0 %v296, 4
      %v613 = vpop.permute.xlu0 %612
      %614 = vrot.lane.b32.xlu0 %v297, 4
      %v615 = vpop.permute.xlu0 %614
      %616 = vrot.lane.b32.xlu0 %v298, 4
      %v617 = vpop.permute.xlu0 %616
      %618 = vrot.lane.b32.xlu0 %v299, 4
      %v619 = vpop.permute.xlu0 %618
      %620 = vrot.lane.b32.xlu0 %v300, 4
      %v621 = vpop.permute.xlu0 %620
      %622 = vrot.lane.b32.xlu0 %v301, 4
      %v623 = vpop.permute.xlu0 %622
      %624 = vrot.lane.b32.xlu0 %v302, 4
      %v625 = vpop.permute.xlu0 %624
      %626 = vrot.lane.b32.xlu0 %v303, 4
      %v627 = vpop.permute.xlu0 %626
      %628 = vrot.lane.b32.xlu0 %v304, 4
      %v629 = vpop.permute.xlu0 %628
      %630 = vrot.lane.b32.xlu0 %v305, 4
      %v631 = vpop.permute.xlu0 %630
      %696 = vrot.lane.b32.xlu0 %v306, 8
      %v697 = vpop.permute.xlu0 %696
      %698 = vrot.lane.b32.xlu0 %v307, 8
      %v699 = vpop.permute.xlu0 %698
      %700 = vrot.lane.b32.xlu0 %v308, 8
      %v701 = vpop.permute.xlu0 %700
      %702 = vrot.lane.b32.xlu0 %v309, 8
      %v703 = vpop.permute.xlu0 %702
      %704 = vrot.lane.b32.xlu0 %v310, 8
      %v705 = vpop.permute.xlu0 %704
      %706 = vrot.lane.b32.xlu0 %v311, 8
      %v707 = vpop.permute.xlu0 %706
      %708 = vrot.lane.b32.xlu0 %v312, 8
      %v709 = vpop.permute.xlu0 %708
      %710 = vrot.lane.b32.xlu0 %v313, 8
      %v711 = vpop.permute.xlu0 %710
      %712 = vrot.lane.b32.xlu0 %v314, 8
      %v713 = vpop.permute.xlu0 %712
      %714 = vrot.lane.b32.xlu0 %v315, 8
      %v715 = vpop.permute.xlu0 %714
      %716 = vrot.lane.b32.xlu0 %v316, 8
      %v717 = vpop.permute.xlu0 %716
      %718 = vrot.lane.b32.xlu0 %v317, 8
      %v719 = vpop.permute.xlu0 %718
      %720 = vrot.lane.b32.xlu0 %v318, 8
      %v721 = vpop.permute.xlu0 %720
      %722 = vrot.lane.b32.xlu0 %v319, 8
      %v723 = vpop.permute.xlu0 %722
      %724 = vrot.lane.b32.xlu0 %v320, 8
      %v725 = vpop.permute.xlu0 %724
      %726 = vrot.lane.b32.xlu0 %v321, 8
      %v727 = vpop.permute.xlu0 %726
      %728 = vrot.lane.b32.xlu0 %v322, 8
      %v729 = vpop.permute.xlu0 %728
      %730 = vrot.lane.b32.xlu0 %v323, 8
      %v731 = vpop.permute.xlu0 %730
      %732 = vrot.lane.b32.xlu0 %v324, 8
      %v733 = vpop.permute.xlu0 %732
      %734 = vrot.lane.b32.xlu0 %v325, 8
      %v735 = vpop.permute.xlu0 %734
      %736 = vrot.lane.b32.xlu0 %v326, 8
      %v737 = vpop.permute.xlu0 %736
      %738 = vrot.lane.b32.xlu0 %v327, 8
      %v739 = vpop.permute.xlu0 %738
      %740 = vrot.lane.b32.xlu0 %v328, 8
      %v741 = vpop.permute.xlu0 %740
      %742 = vrot.lane.b32.xlu0 %v329, 8
      %v743 = vpop.permute.xlu0 %742
      %744 = vrot.lane.b32.xlu0 %v330, 8
      %v745 = vpop.permute.xlu0 %744
      %746 = vrot.lane.b32.xlu0 %v331, 8
      %v747 = vpop.permute.xlu0 %746
      %748 = vrot.lane.b32.xlu0 %v332, 8
      %v749 = vpop.permute.xlu0 %748
      %750 = vrot.lane.b32.xlu0 %v333, 8
      %v751 = vpop.permute.xlu0 %750
      %752 = vrot.lane.b32.xlu0 %v334, 8
      %v753 = vpop.permute.xlu0 %752
      %754 = vrot.lane.b32.xlu0 %v335, 8
      %v755 = vpop.permute.xlu0 %754
      %756 = vrot.lane.b32.xlu0 %v336, 8
      %v757 = vpop.permute.xlu0 %756
      %758 = vrot.lane.b32.xlu0 %v337, 8
      %v759 = vpop.permute.xlu0 %758
      %824 = vrot.lane.b32.xlu0 %v341, 12
      %v825 = vpop.permute.xlu0 %824
      %826 = vrot.lane.b32.xlu0 %v342, 12
      %v827 = vpop.permute.xlu0 %826
      %828 = vrot.lane.b32.xlu0 %v343, 12
      %v829 = vpop.permute.xlu0 %828
      %830 = vrot.lane.b32.xlu0 %v344, 12
      %v831 = vpop.permute.xlu0 %830
      %832 = vrot.lane.b32.xlu0 %v345, 12
      %v833 = vpop.permute.xlu0 %832
      %834 = vrot.lane.b32.xlu0 %v346, 12
      %v835 = vpop.permute.xlu0 %834
      %836 = vrot.lane.b32.xlu0 %v347, 12
      %v837 = vpop.permute.xlu0 %836
      %838 = vrot.lane.b32.xlu0 %v348, 12
      %v839 = vpop.permute.xlu0 %838
      %840 = vrot.lane.b32.xlu0 %v349, 12
      %v841 = vpop.permute.xlu0 %840
      %842 = vrot.lane.b32.xlu0 %v350, 12
      %v843 = vpop.permute.xlu0 %842
      %844 = vrot.lane.b32.xlu0 %v351, 12
      %v845 = vpop.permute.xlu0 %844
      %846 = vrot.lane.b32.xlu0 %v352, 12
      %v847 = vpop.permute.xlu0 %846
      %848 = vrot.lane.b32.xlu0 %v353, 12
      %v849 = vpop.permute.xlu0 %848
      %850 = vrot.lane.b32.xlu0 %v354, 12
      %v851 = vpop.permute.xlu0 %850
      %852 = vrot.lane.b32.xlu0 %v355, 12
      %v853 = vpop.permute.xlu0 %852
      %854 = vrot.lane.b32.xlu0 %v356, 12
      %v855 = vpop.permute.xlu0 %854
      %856 = vrot.lane.b32.xlu0 %v357, 12
      %v857 = vpop.permute.xlu0 %856
      %858 = vrot.lane.b32.xlu0 %v358, 12
      %v859 = vpop.permute.xlu0 %858
      %860 = vrot.lane.b32.xlu0 %v359, 12
      %v861 = vpop.permute.xlu0 %860
      %862 = vrot.lane.b32.xlu0 %v360, 12
      %v863 = vpop.permute.xlu0 %862
      %864 = vrot.lane.b32.xlu0 %v361, 12
      %v865 = vpop.permute.xlu0 %864
      %866 = vrot.lane.b32.xlu0 %v362, 12
      %v867 = vpop.permute.xlu0 %866
      %868 = vrot.lane.b32.xlu0 %v363, 12
      %v869 = vpop.permute.xlu0 %868
      %870 = vrot.lane.b32.xlu0 %v364, 12
      %v871 = vpop.permute.xlu0 %870
      %872 = vrot.lane.b32.xlu0 %v365, 12
      %v873 = vpop.permute.xlu0 %872
      %874 = vrot.lane.b32.xlu0 %v366, 12
      %v875 = vpop.permute.xlu0 %874
      %876 = vrot.lane.b32.xlu0 %v367, 12
      %v877 = vpop.permute.xlu0 %876
      %878 = vrot.lane.b32.xlu0 %v368, 12
      %v879 = vpop.permute.xlu0 %878
      %880 = vrot.lane.b32.xlu0 %v369, 12
      %v881 = vpop.permute.xlu0 %880
      %882 = vrot.lane.b32.xlu0 %v370, 12
      %v883 = vpop.permute.xlu0 %882
      %884 = vrot.lane.b32.xlu0 %v371, 12
      %v885 = vpop.permute.xlu0 %884
      %886 = vrot.lane.b32.xlu0 %v372, 12
      %v887 = vpop.permute.xlu0 %886
      %952 = vrot.lane.b32.xlu0 %v373, 16
      %v953 = vpop.permute.xlu0 %952
      %954 = vrot.lane.b32.xlu0 %v374, 16
      %v955 = vpop.permute.xlu0 %954
      %956 = vrot.lane.b32.xlu0 %v375, 16
      %v957 = vpop.permute.xlu0 %956
      %958 = vrot.lane.b32.xlu0 %v376, 16
      %v959 = vpop.permute.xlu0 %958
      %960 = vrot.lane.b32.xlu0 %v377, 16
      %v961 = vpop.permute.xlu0 %960
      %962 = vrot.lane.b32.xlu0 %v378, 16
      %v963 = vpop.permute.xlu0 %962
      %964 = vrot.lane.b32.xlu0 %v379, 16
      %v965 = vpop.permute.xlu0 %964
      %966 = vrot.lane.b32.xlu0 %v380, 16
      %v967 = vpop.permute.xlu0 %966
      %968 = vrot.lane.b32.xlu0 %v381, 16
      %v969 = vpop.permute.xlu0 %968
      %970 = vrot.lane.b32.xlu0 %v382, 16
      %v971 = vpop.permute.xlu0 %970
      %972 = vrot.lane.b32.xlu0 %v383, 16
      %v973 = vpop.permute.xlu0 %972
      %974 = vrot.lane.b32.xlu0 %v384, 16
      %v975 = vpop.permute.xlu0 %974
      %976 = vrot.lane.b32.xlu0 %v385, 16
      %v977 = vpop.permute.xlu0 %976
      %978 = vrot.lane.b32.xlu0 %v386, 16
      %v979 = vpop.permute.xlu0 %978
      %980 = vrot.lane.b32.xlu0 %v387, 16
      %v981 = vpop.permute.xlu0 %980
      %982 = vrot.lane.b32.xlu0 %v388, 16
      %v983 = vpop.permute.xlu0 %982
      %984 = vrot.lane.b32.xlu0 %v389, 16
      %v985 = vpop.permute.xlu0 %984
      %986 = vrot.lane.b32.xlu0 %v390, 16
      %v987 = vpop.permute.xlu0 %986
      %988 = vrot.lane.b32.xlu0 %v391, 16
      %v989 = vpop.permute.xlu0 %988
      %990 = vrot.lane.b32.xlu0 %v392, 16
      %v991 = vpop.permute.xlu0 %990
      %992 = vrot.lane.b32.xlu0 %v393, 16
      %v993 = vpop.permute.xlu0 %992
      %994 = vrot.lane.b32.xlu0 %v394, 16
      %v995 = vpop.permute.xlu0 %994
      %996 = vrot.lane.b32.xlu0 %v395, 16
      %v997 = vpop.permute.xlu0 %996
      %998 = vrot.lane.b32.xlu0 %v396, 16
      %v999 = vpop.permute.xlu0 %998
      %1000 = vrot.lane.b32.xlu0 %v397, 16
      %v1001 = vpop.permute.xlu0 %1000
      %1002 = vrot.lane.b32.xlu0 %v398, 16
      %v1003 = vpop.permute.xlu0 %1002
      %1004 = vrot.lane.b32.xlu0 %v399, 16
      %v1005 = vpop.permute.xlu0 %1004
      %1006 = vrot.lane.b32.xlu0 %v400, 16
      %v1007 = vpop.permute.xlu0 %1006
      %1008 = vrot.lane.b32.xlu0 %v401, 16
      %v1009 = vpop.permute.xlu0 %1008
      %1010 = vrot.lane.b32.xlu0 %v402, 16
      %v1011 = vpop.permute.xlu0 %1010
      %1012 = vrot.lane.b32.xlu0 %v403, 16
      %v1013 = vpop.permute.xlu0 %1012
      %1014 = vrot.lane.b32.xlu0 %v404, 16
      %v1015 = vpop.permute.xlu0 %1014
      %1080 = vrot.lane.b32.xlu0 %v405, 20
      %v1081 = vpop.permute.xlu0 %1080
      %1082 = vrot.lane.b32.xlu0 %v406, 20
      %v1083 = vpop.permute.xlu0 %1082
      %1084 = vrot.lane.b32.xlu0 %v407, 20
      %v1085 = vpop.permute.xlu0 %1084
      %1086 = vrot.lane.b32.xlu0 %v408, 20
      %v1087 = vpop.permute.xlu0 %1086
      %1088 = vrot.lane.b32.xlu0 %v409, 20
      %v1089 = vpop.permute.xlu0 %1088
      %1090 = vrot.lane.b32.xlu0 %v410, 20
      %v1091 = vpop.permute.xlu0 %1090
      %1092 = vrot.lane.b32.xlu0 %v411, 20
      %v1093 = vpop.permute.xlu0 %1092
      %1094 = vrot.lane.b32.xlu0 %v412, 20
      %v1095 = vpop.permute.xlu0 %1094
      %1096 = vrot.lane.b32.xlu0 %v413, 20
      %v1097 = vpop.permute.xlu0 %1096
      %1098 = vrot.lane.b32.xlu0 %v414, 20
      %v1099 = vpop.permute.xlu0 %1098
      %1100 = vrot.lane.b32.xlu0 %v415, 20
      %v1101 = vpop.permute.xlu0 %1100
      %1102 = vrot.lane.b32.xlu0 %v416, 20
      %v1103 = vpop.permute.xlu0 %1102
      %1104 = vrot.lane.b32.xlu0 %v417, 20
      %v1105 = vpop.permute.xlu0 %1104
      %1106 = vrot.lane.b32.xlu0 %v418, 20
      %v1107 = vpop.permute.xlu0 %1106
      %1108 = vrot.lane.b32.xlu0 %v419, 20
      %v1109 = vpop.permute.xlu0 %1108
      %1110 = vrot.lane.b32.xlu0 %v420, 20
      %v1111 = vpop.permute.xlu0 %1110
      %1112 = vrot.lane.b32.xlu0 %v421, 20
      %v1113 = vpop.permute.xlu0 %1112
      %1114 = vrot.lane.b32.xlu0 %v422, 20
      %v1115 = vpop.permute.xlu0 %1114
      %1116 = vrot.lane.b32.xlu0 %v423, 20
      %v1117 = vpop.permute.xlu0 %1116
      %1118 = vrot.lane.b32.xlu0 %v424, 20
      %v1119 = vpop.permute.xlu0 %1118
      %1120 = vrot.lane.b32.xlu0 %v425, 20
      %v1121 = vpop.permute.xlu0 %1120
      %1122 = vrot.lane.b32.xlu0 %v426, 20
      %v1123 = vpop.permute.xlu0 %1122
      %1124 = vrot.lane.b32.xlu0 %v427, 20
      %v1125 = vpop.permute.xlu0 %1124
      %1126 = vrot.lane.b32.xlu0 %v428, 20
      %v1127 = vpop.permute.xlu0 %1126
      %1128 = vrot.lane.b32.xlu0 %v429, 20
      %v1129 = vpop.permute.xlu0 %1128
      %1130 = vrot.lane.b32.xlu0 %v430, 20
      %v1131 = vpop.permute.xlu0 %1130
      %1132 = vrot.lane.b32.xlu0 %v431, 20
      %v1133 = vpop.permute.xlu0 %1132
      %1134 = vrot.lane.b32.xlu0 %v432, 20
      %v1135 = vpop.permute.xlu0 %1134
      %1136 = vrot.lane.b32.xlu0 %v433, 20
      %v1137 = vpop.permute.xlu0 %1136
      %1138 = vrot.lane.b32.xlu0 %v434, 20
      %v1139 = vpop.permute.xlu0 %1138
      %1140 = vrot.lane.b32.xlu0 %v435, 20
      %v1141 = vpop.permute.xlu0 %1140
      %1142 = vrot.lane.b32.xlu0 %v436, 20
      %v1143 = vpop.permute.xlu0 %1142
      %1208 = vrot.lane.b32.xlu0 %v440, 24
      %v1209 = vpop.permute.xlu0 %1208
      %1210 = vrot.lane.b32.xlu0 %v441, 24
      %v1211 = vpop.permute.xlu0 %1210
      %1212 = vrot.lane.b32.xlu0 %v442, 24
      %v1213 = vpop.permute.xlu0 %1212
      %1214 = vrot.lane.b32.xlu0 %v443, 24
      %v1215 = vpop.permute.xlu0 %1214
      %1216 = vrot.lane.b32.xlu0 %v444, 24
      %v1217 = vpop.permute.xlu0 %1216
      %1218 = vrot.lane.b32.xlu0 %v445, 24
      %v1219 = vpop.permute.xlu0 %1218
      %1220 = vrot.lane.b32.xlu0 %v446, 24
      %v1221 = vpop.permute.xlu0 %1220
      %1222 = vrot.lane.b32.xlu0 %v447, 24
      %v1223 = vpop.permute.xlu0 %1222
      %1224 = vrot.lane.b32.xlu0 %v448, 24
      %v1225 = vpop.permute.xlu0 %1224
      %1226 = vrot.lane.b32.xlu0 %v449, 24
      %v1227 = vpop.permute.xlu0 %1226
      %1228 = vrot.lane.b32.xlu0 %v450, 24
      %v1229 = vpop.permute.xlu0 %1228
      %1230 = vrot.lane.b32.xlu0 %v451, 24
      %v1231 = vpop.permute.xlu0 %1230
      %1232 = vrot.lane.b32.xlu0 %v452, 24
      %v1233 = vpop.permute.xlu0 %1232
      %1234 = vrot.lane.b32.xlu0 %v453, 24
      %v1235 = vpop.permute.xlu0 %1234
      %1236 = vrot.lane.b32.xlu0 %v454, 24
      %v1237 = vpop.permute.xlu0 %1236
      %1238 = vrot.lane.b32.xlu0 %v455, 24
      %v1239 = vpop.permute.xlu0 %1238
      %1240 = vrot.lane.b32.xlu0 %v456, 24
      %v1241 = vpop.permute.xlu0 %1240
      %1242 = vrot.lane.b32.xlu0 %v457, 24
      %v1243 = vpop.permute.xlu0 %1242
      %1244 = vrot.lane.b32.xlu0 %v458, 24
      %v1245 = vpop.permute.xlu0 %1244
      %1246 = vrot.lane.b32.xlu0 %v459, 24
      %v1247 = vpop.permute.xlu0 %1246
      %1248 = vrot.lane.b32.xlu0 %v460, 24
      %v1249 = vpop.permute.xlu0 %1248
      %1250 = vrot.lane.b32.xlu0 %v461, 24
      %v1251 = vpop.permute.xlu0 %1250
      %1252 = vrot.lane.b32.xlu0 %v462, 24
      %v1253 = vpop.permute.xlu0 %1252
      %1254 = vrot.lane.b32.xlu0 %v463, 24
      %v1255 = vpop.permute.xlu0 %1254
      %1256 = vrot.lane.b32.xlu0 %v464, 24
      %v1257 = vpop.permute.xlu0 %1256
      %1258 = vrot.lane.b32.xlu0 %v465, 24
      %v1259 = vpop.permute.xlu0 %1258
      %1260 = vrot.lane.b32.xlu0 %v466, 24
      %v1261 = vpop.permute.xlu0 %1260
      %1262 = vrot.lane.b32.xlu0 %v467, 24
      %v1263 = vpop.permute.xlu0 %1262
      %1264 = vrot.lane.b32.xlu0 %v468, 24
      %v1265 = vpop.permute.xlu0 %1264
      %1266 = vrot.lane.b32.xlu0 %v469, 24
      %v1267 = vpop.permute.xlu0 %1266
      %1268 = vrot.lane.b32.xlu0 %v470, 24
      %v1269 = vpop.permute.xlu0 %1268
      %1270 = vrot.lane.b32.xlu0 %v471, 24
      %v1271 = vpop.permute.xlu0 %1270
      %1336 = vrot.lane.b32.xlu0 %v472, 28
      %v1337 = vpop.permute.xlu0 %1336
      %1338 = vrot.lane.b32.xlu0 %v473, 28
      %v1339 = vpop.permute.xlu0 %1338
      %1340 = vrot.lane.b32.xlu0 %v474, 28
      %v1341 = vpop.permute.xlu0 %1340
      %1342 = vrot.lane.b32.xlu0 %v475, 28
      %v1343 = vpop.permute.xlu0 %1342
      %1344 = vrot.lane.b32.xlu0 %v476, 28
      %v1345 = vpop.permute.xlu0 %1344
      %1346 = vrot.lane.b32.xlu0 %v477, 28
      %v1347 = vpop.permute.xlu0 %1346
      %1348 = vrot.lane.b32.xlu0 %v478, 28
      %v1349 = vpop.permute.xlu0 %1348
      %1350 = vrot.lane.b32.xlu0 %v479, 28
      %v1351 = vpop.permute.xlu0 %1350
      %1352 = vrot.lane.b32.xlu0 %v480, 28
      %v1353 = vpop.permute.xlu0 %1352
      %1354 = vrot.lane.b32.xlu0 %v481, 28
      %v1355 = vpop.permute.xlu0 %1354
      %1356 = vrot.lane.b32.xlu0 %v482, 28
      %v1357 = vpop.permute.xlu0 %1356
      %1358 = vrot.lane.b32.xlu0 %v483, 28
      %v1359 = vpop.permute.xlu0 %1358
      %1360 = vrot.lane.b32.xlu0 %v484, 28
      %v1361 = vpop.permute.xlu0 %1360
      %1362 = vrot.lane.b32.xlu0 %v485, 28
      %v1363 = vpop.permute.xlu0 %1362
      %1364 = vrot.lane.b32.xlu0 %v486, 28
      %v1365 = vpop.permute.xlu0 %1364
      %1366 = vrot.lane.b32.xlu0 %v487, 28
      %v1367 = vpop.permute.xlu0 %1366
      %1368 = vrot.lane.b32.xlu0 %v488, 28
      %v1369 = vpop.permute.xlu0 %1368
      %1370 = vrot.lane.b32.xlu0 %v489, 28
      %v1371 = vpop.permute.xlu0 %1370
      %1372 = vrot.lane.b32.xlu0 %v490, 28
      %v1373 = vpop.permute.xlu0 %1372
      %1374 = vrot.lane.b32.xlu0 %v491, 28
      %v1375 = vpop.permute.xlu0 %1374
      %1376 = vrot.lane.b32.xlu0 %v492, 28
      %v1377 = vpop.permute.xlu0 %1376
      %1378 = vrot.lane.b32.xlu0 %v493, 28
      %v1379 = vpop.permute.xlu0 %1378
      %1380 = vrot.lane.b32.xlu0 %v494, 28
      %v1381 = vpop.permute.xlu0 %1380
      %1382 = vrot.lane.b32.xlu0 %v495, 28
      %v1383 = vpop.permute.xlu0 %1382
      %1384 = vrot.lane.b32.xlu0 %v496, 28
      %v1385 = vpop.permute.xlu0 %1384
      %1386 = vrot.lane.b32.xlu0 %v497, 28
      %v1387 = vpop.permute.xlu0 %1386
      %1388 = vrot.lane.b32.xlu0 %v498, 28
      %v1389 = vpop.permute.xlu0 %1388
      %1390 = vrot.lane.b32.xlu0 %v499, 28
      %v1391 = vpop.permute.xlu0 %1390
      %1392 = vrot.lane.b32.xlu0 %v500, 28
      %v1393 = vpop.permute.xlu0 %1392
      %1394 = vrot.lane.b32.xlu0 %v501, 28
      %v1395 = vpop.permute.xlu0 %1394
      %1396 = vrot.lane.b32.xlu0 %v502, 28
      %v1397 = vpop.permute.xlu0 %1396
      %1398 = vrot.lane.b32.xlu0 %v503, 28
      %v1399 = vpop.permute.xlu0 %1398
      %1464 = vrot.lane.b32.xlu0 %v504, 32
      %v1465 = vpop.permute.xlu0 %1464
      %1466 = vrot.lane.b32.xlu0 %v505, 32
      %v1467 = vpop.permute.xlu0 %1466
      %1468 = vrot.lane.b32.xlu0 %v506, 32
      %v1469 = vpop.permute.xlu0 %1468
      %1470 = vrot.lane.b32.xlu0 %v507, 32
      %v1471 = vpop.permute.xlu0 %1470
      %1472 = vrot.lane.b32.xlu0 %v508, 32
      %v1473 = vpop.permute.xlu0 %1472
      %1474 = vrot.lane.b32.xlu0 %v509, 32
      %v1475 = vpop.permute.xlu0 %1474
      %1476 = vrot.lane.b32.xlu0 %v510, 32
      %v1477 = vpop.permute.xlu0 %1476
      %1478 = vrot.lane.b32.xlu0 %v511, 32
      %v1479 = vpop.permute.xlu0 %1478
      %1480 = vrot.lane.b32.xlu0 %v512, 32
      %v1481 = vpop.permute.xlu0 %1480
      %1482 = vrot.lane.b32.xlu0 %v513, 32
      %v1483 = vpop.permute.xlu0 %1482
      %1484 = vrot.lane.b32.xlu0 %v514, 32
      %v1485 = vpop.permute.xlu0 %1484
      %1486 = vrot.lane.b32.xlu0 %v515, 32
      %v1487 = vpop.permute.xlu0 %1486
      %1488 = vrot.lane.b32.xlu0 %v516, 32
      %v1489 = vpop.permute.xlu0 %1488
      %1490 = vrot.lane.b32.xlu0 %v517, 32
      %v1491 = vpop.permute.xlu0 %1490
      %1492 = vrot.lane.b32.xlu0 %v518, 32
      %v1493 = vpop.permute.xlu0 %1492
      %1494 = vrot.lane.b32.xlu0 %v519, 32
      %v1495 = vpop.permute.xlu0 %1494
      %1496 = vrot.lane.b32.xlu0 %v520, 32
      %v1497 = vpop.permute.xlu0 %1496
      %1498 = vrot.lane.b32.xlu0 %v521, 32
      %v1499 = vpop.permute.xlu0 %1498
      %1500 = vrot.lane.b32.xlu0 %v522, 32
      %v1501 = vpop.permute.xlu0 %1500
      %1502 = vrot.lane.b32.xlu0 %v523, 32
      %v1503 = vpop.permute.xlu0 %1502
      %1504 = vrot.lane.b32.xlu0 %v524, 32
      %v1505 = vpop.permute.xlu0 %1504
      %1506 = vrot.lane.b32.xlu0 %v525, 32
      %v1507 = vpop.permute.xlu0 %1506
      %1508 = vrot.lane.b32.xlu0 %v526, 32
      %v1509 = vpop.permute.xlu0 %1508
      %1510 = vrot.lane.b32.xlu0 %v527, 32
      %v1511 = vpop.permute.xlu0 %1510
      %1512 = vrot.lane.b32.xlu0 %v528, 32
      %v1513 = vpop.permute.xlu0 %1512
      %1514 = vrot.lane.b32.xlu0 %v529, 32
      %v1515 = vpop.permute.xlu0 %1514
      %1516 = vrot.lane.b32.xlu0 %v530, 32
      %v1517 = vpop.permute.xlu0 %1516
      %1518 = vrot.lane.b32.xlu0 %v531, 32
      %v1519 = vpop.permute.xlu0 %1518
      %1520 = vrot.lane.b32.xlu0 %v532, 32
      %v1521 = vpop.permute.xlu0 %1520
      %1522 = vrot.lane.b32.xlu0 %v533, 32
      %v1523 = vpop.permute.xlu0 %1522
      %1524 = vrot.lane.b32.xlu0 %v534, 32
      %v1525 = vpop.permute.xlu0 %1524
      %1526 = vrot.lane.b32.xlu0 %v535, 32
      %v1527 = vpop.permute.xlu0 %1526
      %vm1560 = vcmask 31744
      %v1561 = vsel %vm1560, %v242, %v569
      %v1562 = vsel %vm1560, %v243, %v571
      %v1563 = vsel %vm1560, %v244, %v573
      %v1564 = vsel %vm1560, %v245, %v575
      %v1565 = vsel %vm1560, %v246, %v577
      %v1566 = vsel %vm1560, %v247, %v579
      %v1567 = vsel %vm1560, %v248, %v581
      %v1568 = vsel %vm1560, %v249, %v583
      %v1569 = vsel %vm1560, %v250, %v585
      %v1570 = vsel %vm1560, %v251, %v587
      %v1571 = vsel %vm1560, %v252, %v589
      %v1572 = vsel %vm1560, %v253, %v591
      %v1573 = vsel %vm1560, %v254, %v593
      %v1574 = vsel %vm1560, %v255, %v595
      %v1575 = vsel %vm1560, %v256, %v597
      %v1576 = vsel %vm1560, %v257, %v599
      %v1577 = vsel %vm1560, %v258, %v601
      %v1578 = vsel %vm1560, %v259, %v603
      %v1579 = vsel %vm1560, %v260, %v605
      %v1580 = vsel %vm1560, %v261, %v607
      %v1581 = vsel %vm1560, %v262, %v609
      %v1582 = vsel %vm1560, %v263, %v611
      %v1583 = vsel %vm1560, %v264, %v613
      %v1584 = vsel %vm1560, %v265, %v615
      %v1585 = vsel %vm1560, %v266, %v617
      %v1586 = vsel %vm1560, %v267, %v619
      %v1587 = vsel %vm1560, %v268, %v621
      %v1588 = vsel %vm1560, %v269, %v623
      %v1589 = vsel %vm1560, %v270, %v625
      %v1590 = vsel %vm1560, %v271, %v627
      %v1591 = vsel %vm1560, %v272, %v629
      %v1592 = vsel %vm1560, %v273, %v631
      %vm1593 = vcmask 64512
      %v1594 = vsel %vm1593, %v1561, %v697
      %v1595 = vsel %vm1593, %v1562, %v699
      %v1596 = vsel %vm1593, %v1563, %v701
      %v1597 = vsel %vm1593, %v1564, %v703
      %v1598 = vsel %vm1593, %v1565, %v705
      %v1599 = vsel %vm1593, %v1566, %v707
      %v1600 = vsel %vm1593, %v1567, %v709
      %v1601 = vsel %vm1593, %v1568, %v711
      %v1602 = vsel %vm1593, %v1569, %v713
      %v1603 = vsel %vm1593, %v1570, %v715
      %v1604 = vsel %vm1593, %v1571, %v717
      %v1605 = vsel %vm1593, %v1572, %v719
      %v1606 = vsel %vm1593, %v1573, %v721
      %v1607 = vsel %vm1593, %v1574, %v723
      %v1608 = vsel %vm1593, %v1575, %v725
      %v1609 = vsel %vm1593, %v1576, %v727
      %v1610 = vsel %vm1593, %v1577, %v729
      %v1611 = vsel %vm1593, %v1578, %v731
      %v1612 = vsel %vm1593, %v1579, %v733
      %v1613 = vsel %vm1593, %v1580, %v735
      %v1614 = vsel %vm1593, %v1581, %v737
      %v1615 = vsel %vm1593, %v1582, %v739
      %v1616 = vsel %vm1593, %v1583, %v741
      %v1617 = vsel %vm1593, %v1584, %v743
      %v1618 = vsel %vm1593, %v1585, %v745
      %v1619 = vsel %vm1593, %v1586, %v747
      %v1620 = vsel %vm1593, %v1587, %v749
      %v1621 = vsel %vm1593, %v1588, %v751
      %v1622 = vsel %vm1593, %v1589, %v753
      %v1623 = vsel %vm1593, %v1590, %v755
      %v1624 = vsel %vm1593, %v1591, %v757
      %v1625 = vsel %vm1593, %v1592, %v759
      %vm1626 = vcmask 97280
      %v1627 = vsel %vm1626, %v1594, %v825
      %v1628 = vsel %vm1626, %v1595, %v827
      %v1629 = vsel %vm1626, %v1596, %v829
      %v1630 = vsel %vm1626, %v1597, %v831
      %v1631 = vsel %vm1626, %v1598, %v833
      %v1632 = vsel %vm1626, %v1599, %v835
      %v1633 = vsel %vm1626, %v1600, %v837
      %v1634 = vsel %vm1626, %v1601, %v839
      %v1635 = vsel %vm1626, %v1602, %v841
      %v1636 = vsel %vm1626, %v1603, %v843
      %v1637 = vsel %vm1626, %v1604, %v845
      %v1638 = vsel %vm1626, %v1605, %v847
      %v1639 = vsel %vm1626, %v1606, %v849
      %v1640 = vsel %vm1626, %v1607, %v851
      %v1641 = vsel %vm1626, %v1608, %v853
      %v1642 = vsel %vm1626, %v1609, %v855
      %v1643 = vsel %vm1626, %v1610, %v857
      %v1644 = vsel %vm1626, %v1611, %v859
      %v1645 = vsel %vm1626, %v1612, %v861
      %v1646 = vsel %vm1626, %v1613, %v863
      %v1647 = vsel %vm1626, %v1614, %v865
      %v1648 = vsel %vm1626, %v1615, %v867
      %v1649 = vsel %vm1626, %v1616, %v869
      %v1650 = vsel %vm1626, %v1617, %v871
      %v1651 = vsel %vm1626, %v1618, %v873
      %v1652 = vsel %vm1626, %v1619, %v875
      %v1653 = vsel %vm1626, %v1620, %v877
      %v1654 = vsel %vm1626, %v1621, %v879
      %v1655 = vsel %vm1626, %v1622, %v881
      %v1656 = vsel %vm1626, %v1623, %v883
      %v1657 = vsel %vm1626, %v1624, %v885
      %v1658 = vsel %vm1626, %v1625, %v887
      %vm1659 = vcmask 130048
      %v1660 = vsel %vm1659, %v1627, %v953
      %v1661 = vsel %vm1659, %v1628, %v955
      %v1662 = vsel %vm1659, %v1629, %v957
      %v1663 = vsel %vm1659, %v1630, %v959
      %v1664 = vsel %vm1659, %v1631, %v961
      %v1665 = vsel %vm1659, %v1632, %v963
      %v1666 = vsel %vm1659, %v1633, %v965
      %v1667 = vsel %vm1659, %v1634, %v967
      %v1668 = vsel %vm1659, %v1635, %v969
      %v1669 = vsel %vm1659, %v1636, %v971
      %v1670 = vsel %vm1659, %v1637, %v973
      %v1671 = vsel %vm1659, %v1638, %v975
      %v1672 = vsel %vm1659, %v1639, %v977
      %v1673 = vsel %vm1659, %v1640, %v979
      %v1674 = vsel %vm1659, %v1641, %v981
      %v1675 = vsel %vm1659, %v1642, %v983
      %v1676 = vsel %vm1659, %v1643, %v985
      %v1677 = vsel %vm1659, %v1644, %v987
      %v1678 = vsel %vm1659, %v1645, %v989
      %v1679 = vsel %vm1659, %v1646, %v991
      %v1680 = vsel %vm1659, %v1647, %v993
      %v1681 = vsel %vm1659, %v1648, %v995
      %v1682 = vsel %vm1659, %v1649, %v997
      %v1683 = vsel %vm1659, %v1650, %v999
      %v1684 = vsel %vm1659, %v1651, %v1001
      %v1685 = vsel %vm1659, %v1652, %v1003
      %v1686 = vsel %vm1659, %v1653, %v1005
      %v1687 = vsel %vm1659, %v1654, %v1007
      %v1688 = vsel %vm1659, %v1655, %v1009
      %v1689 = vsel %vm1659, %v1656, %v1011
      %v1690 = vsel %vm1659, %v1657, %v1013
      %v1691 = vsel %vm1659, %v1658, %v1015
      %vm1692 = vcmask 162816
      %v1693 = vsel %vm1692, %v1660, %v1081
      %v1694 = vsel %vm1692, %v1661, %v1083
      %v1695 = vsel %vm1692, %v1662, %v1085
      %v1696 = vsel %vm1692, %v1663, %v1087
      %v1697 = vsel %vm1692, %v1664, %v1089
      %v1698 = vsel %vm1692, %v1665, %v1091
      %v1699 = vsel %vm1692, %v1666, %v1093
      %v1700 = vsel %vm1692, %v1667, %v1095
      %v1701 = vsel %vm1692, %v1668, %v1097
      %v1702 = vsel %vm1692, %v1669, %v1099
      %v1703 = vsel %vm1692, %v1670, %v1101
      %v1704 = vsel %vm1692, %v1671, %v1103
      %v1705 = vsel %vm1692, %v1672, %v1105
      %v1706 = vsel %vm1692, %v1673, %v1107
      %v1707 = vsel %vm1692, %v1674, %v1109
      %v1708 = vsel %vm1692, %v1675, %v1111
      %v1709 = vsel %vm1692, %v1676, %v1113
      %v1710 = vsel %vm1692, %v1677, %v1115
      %v1711 = vsel %vm1692, %v1678, %v1117
      %v1712 = vsel %vm1692, %v1679, %v1119
      %v1713 = vsel %vm1692, %v1680, %v1121
      %v1714 = vsel %vm1692, %v1681, %v1123
      %v1715 = vsel %vm1692, %v1682, %v1125
      %v1716 = vsel %vm1692, %v1683, %v1127
      %v1717 = vsel %vm1692, %v1684, %v1129
      %v1718 = vsel %vm1692, %v1685, %v1131
      %v1719 = vsel %vm1692, %v1686, %v1133
      %v1720 = vsel %vm1692, %v1687, %v1135
      %v1721 = vsel %vm1692, %v1688, %v1137
      %v1722 = vsel %vm1692, %v1689, %v1139
      %v1723 = vsel %vm1692, %v1690, %v1141
      %v1724 = vsel %vm1692, %v1691, %v1143
      %vm1725 = vcmask 195584
      %v1726 = vsel %vm1725, %v1693, %v1209
      %v1727 = vsel %vm1725, %v1694, %v1211
      %v1728 = vsel %vm1725, %v1695, %v1213
      %v1729 = vsel %vm1725, %v1696, %v1215
      %v1730 = vsel %vm1725, %v1697, %v1217
      %v1731 = vsel %vm1725, %v1698, %v1219
      %v1732 = vsel %vm1725, %v1699, %v1221
      %v1733 = vsel %vm1725, %v1700, %v1223
      %v1734 = vsel %vm1725, %v1701, %v1225
      %v1735 = vsel %vm1725, %v1702, %v1227
      %v1736 = vsel %vm1725, %v1703, %v1229
      %v1737 = vsel %vm1725, %v1704, %v1231
      %v1738 = vsel %vm1725, %v1705, %v1233
      %v1739 = vsel %vm1725, %v1706, %v1235
      %v1740 = vsel %vm1725, %v1707, %v1237
      %v1741 = vsel %vm1725, %v1708, %v1239
      %v1742 = vsel %vm1725, %v1709, %v1241
      %v1743 = vsel %vm1725, %v1710, %v1243
      %v1744 = vsel %vm1725, %v1711, %v1245
      %v1745 = vsel %vm1725, %v1712, %v1247
      %v1746 = vsel %vm1725, %v1713, %v1249
      %v1747 = vsel %vm1725, %v1714, %v1251
      %v1748 = vsel %vm1725, %v1715, %v1253
      %v1749 = vsel %vm1725, %v1716, %v1255
      %v1750 = vsel %vm1725, %v1717, %v1257
      %v1751 = vsel %vm1725, %v1718, %v1259
      %v1752 = vsel %vm1725, %v1719, %v1261
      %v1753 = vsel %vm1725, %v1720, %v1263
      %v1754 = vsel %vm1725, %v1721, %v1265
      %v1755 = vsel %vm1725, %v1722, %v1267
      %v1756 = vsel %vm1725, %v1723, %v1269
      %v1757 = vsel %vm1725, %v1724, %v1271
      %vm1758 = vcmask 228352
      %v1759 = vsel %vm1758, %v1726, %v1337
      %v1760 = vsel %vm1758, %v1727, %v1339
      %v1761 = vsel %vm1758, %v1728, %v1341
      %v1762 = vsel %vm1758, %v1729, %v1343
      %v1763 = vsel %vm1758, %v1730, %v1345
      %v1764 = vsel %vm1758, %v1731, %v1347
      %v1765 = vsel %vm1758, %v1732, %v1349
      %v1766 = vsel %vm1758, %v1733, %v1351
      %v1767 = vsel %vm1758, %v1734, %v1353
      %v1768 = vsel %vm1758, %v1735, %v1355
      %v1769 = vsel %vm1758, %v1736, %v1357
      %v1770 = vsel %vm1758, %v1737, %v1359
      %v1771 = vsel %vm1758, %v1738, %v1361
      %v1772 = vsel %vm1758, %v1739, %v1363
      %v1773 = vsel %vm1758, %v1740, %v1365
      %v1774 = vsel %vm1758, %v1741, %v1367
      %v1775 = vsel %vm1758, %v1742, %v1369
      %v1776 = vsel %vm1758, %v1743, %v1371
      %v1777 = vsel %vm1758, %v1744, %v1373
      %v1778 = vsel %vm1758, %v1745, %v1375
      %v1779 = vsel %vm1758, %v1746, %v1377
      %v1780 = vsel %vm1758, %v1747, %v1379
      %v1781 = vsel %vm1758, %v1748, %v1381
      %v1782 = vsel %vm1758, %v1749, %v1383
      %v1783 = vsel %vm1758, %v1750, %v1385
      %v1784 = vsel %vm1758, %v1751, %v1387
      %v1785 = vsel %vm1758, %v1752, %v1389
      %v1786 = vsel %vm1758, %v1753, %v1391
      %v1787 = vsel %vm1758, %v1754, %v1393
      %v1788 = vsel %vm1758, %v1755, %v1395
      %v1789 = vsel %vm1758, %v1756, %v1397
      %v1790 = vsel %vm1758, %v1757, %v1399
      %vm1791 = vcmask 261120
      %v1792 = vsel %vm1791, %v1759, %v1465
      %v1793 = vsel %vm1791, %v1760, %v1467
      %v1794 = vsel %vm1791, %v1761, %v1469
      %v1795 = vsel %vm1791, %v1762, %v1471
      %v1796 = vsel %vm1791, %v1763, %v1473
      %v1797 = vsel %vm1791, %v1764, %v1475
      %v1798 = vsel %vm1791, %v1765, %v1477
      %v1799 = vsel %vm1791, %v1766, %v1479
      %v1800 = vsel %vm1791, %v1767, %v1481
      %v1801 = vsel %vm1791, %v1768, %v1483
      %v1802 = vsel %vm1791, %v1769, %v1485
      %v1803 = vsel %vm1791, %v1770, %v1487
      %v1804 = vsel %vm1791, %v1771, %v1489
      %v1805 = vsel %vm1791, %v1772, %v1491
      %v1806 = vsel %vm1791, %v1773, %v1493
      %v1807 = vsel %vm1791, %v1774, %v1495
      %v1808 = vsel %vm1791, %v1775, %v1497
      %v1809 = vsel %vm1791, %v1776, %v1499
      %v1810 = vsel %vm1791, %v1777, %v1501
      %v1811 = vsel %vm1791, %v1778, %v1503
      %v1812 = vsel %vm1791, %v1779, %v1505
      %v1813 = vsel %vm1791, %v1780, %v1507
      %v1814 = vsel %vm1791, %v1781, %v1509
      %v1815 = vsel %vm1791, %v1782, %v1511
      %v1816 = vsel %vm1791, %v1783, %v1513
      %v1817 = vsel %vm1791, %v1784, %v1515
      %v1818 = vsel %vm1791, %v1785, %v1517
      %v1819 = vsel %vm1791, %v1786, %v1519
      %v1820 = vsel %vm1791, %v1787, %v1521
      %v1821 = vsel %vm1791, %v1788, %v1523
      %v1822 = vsel %vm1791, %v1789, %v1525
      %v1823 = vsel %vm1791, %v1790, %v1527
      %v1824 = vld [vmem:[%s223] sm:$0xff]
      %v1825 = vld [vmem:[%s223 + $0x8] sm:$0xff]
      %v1826 = vld [vmem:[%s223 + $0x10] sm:$0xff]
      %v1827 = vld [vmem:[%s223 + $0x18] sm:$0xff]
      %v1828 = vld [vmem:[%s223 + $0x20] sm:$0xf]
      %v1829 = vld [vmem:[%s226] sm:$0x1]
      %v1831 = vlaneseq
      %v1832 = vshrl.u32 %v1831, 7
      %v1833 = vsub.s32 0, %v1832
      %v1834 = vrot.slane %v1829, %v1833
      %vm1836 = vcmask 293888
      %v1838 = vsel %vm1836, %v1792, 0
      %v1841 = vsel %vm1836, %v1793, 0
      %v1844 = vsel %vm1836, %v1794, 0
      %v1847 = vsel %vm1836, %v1795, 0
      %v1850 = vsel %vm1836, %v1796, 0
      %v1853 = vsel %vm1836, %v1797, 0
      %v1856 = vsel %vm1836, %v1798, 0
      %v1859 = vsel %vm1836, %v1799, 0
      %v1862 = vsel %vm1836, %v1800, 0
      %v1865 = vsel %vm1836, %v1801, 0
      %v1868 = vsel %vm1836, %v1802, 0
      %v1871 = vsel %vm1836, %v1803, 0
      %v1874 = vsel %vm1836, %v1804, 0
      %v1877 = vsel %vm1836, %v1805, 0
      %v1880 = vsel %vm1836, %v1806, 0
      %v1883 = vsel %vm1836, %v1807, 0
      %v1886 = vsel %vm1836, %v1808, 0
      %v1889 = vsel %vm1836, %v1809, 0
      %v1892 = vsel %vm1836, %v1810, 0
      %v1895 = vsel %vm1836, %v1811, 0
      %v1898 = vsel %vm1836, %v1812, 0
      %v1901 = vsel %vm1836, %v1813, 0
      %v1904 = vsel %vm1836, %v1814, 0
      %v1907 = vsel %vm1836, %v1815, 0
      %v1910 = vsel %vm1836, %v1816, 0
      %v1913 = vsel %vm1836, %v1817, 0
      %v1916 = vsel %vm1836, %v1818, 0
      %v1919 = vsel %vm1836, %v1819, 0
      %v1922 = vsel %vm1836, %v1820, 0
      %v1925 = vsel %vm1836, %v1821, 0
      %v1928 = vsel %vm1836, %v1822, 0
      %v1931 = vsel %vm1836, %v1823, 0
      %vm1933 = vcmask 1043456
      %v1935 = vsel %vm1933, %v1828, 0
      %1937 = vmatprep.subr.mxu0 0.0
      %1938 = vmatpush1.msra.mxu0 %v1824
      %1939 = vmatprep.subr.mxu0 0.0
      %1940 = vmatpush1.msra.mxu0 %v1825
      %1941 = vmatprep.subr.mxu0 0.0
      %1942 = vmatpush1.msra.mxu0 %v1826
      %1943 = vmatprep.subr.mxu0 0.0
      %1944 = vmatpush1.msra.mxu0 %v1827
      %1945 = vmatprep.subr.mxu0 0.0
      %1946 = vmatpush1.msra.mxu0 %v1935
      %1947 = vmatprep.subr.mxu0 0.0
      %1948 = vmatpush1.msra.mxu0 0.0
      %1949 = vmatprep.subr.mxu0 0.0
      %1950 = vmatpush1.msra.mxu0 0.0
      %1951 = vmatprep.subr.mxu0 0.0
      %1952 = vmatpush1.msra.mxu0 0.0
      %1953 = vmatprep.subr.mxu0 0.0
      %1954 = vmatpush1.msra.mxu0 0.0
      %1955 = vmatprep.subr.mxu0 0.0
      %1956 = vmatpush1.msra.mxu0 0.0
      %1957 = vmatprep.subr.mxu0 0.0
      %1958 = vmatpush1.msra.mxu0 0.0
      %1959 = vmatprep.subr.mxu0 0.0
      %1960 = vmatpush1.msra.mxu0 0.0
      %1961 = vmatprep.subr.mxu0 0.0
      %1962 = vmatpush1.msra.mxu0 0.0
      %1963 = vmatprep.subr.mxu0 0.0
      %1964 = vmatpush1.msra.mxu0 0.0
      %1965 = vmatprep.subr.mxu0 0.0
      %1966 = vmatpush1.msra.mxu0 0.0
      %1967 = vmatprep.subr.mxu0 0.0
      %1968 = vmatpush1.msra.mxu0 0.0
      %1969 = vmatprep.subr.mxu0 0.0
      %1970 = vmatpush1.msra.mxu0 0.0
      %1971 = vmatprep.subr.mxu0 0.0
      %1972 = vmatpush1.msra.mxu0 0.0
      %1973 = vmatprep.subr.mxu0 0.0
      %1974 = vmatpush1.msra.mxu0 0.0
      %1975 = vmatprep.subr.mxu0 0.0
      %1976 = vmatpush1.msra.mxu0 0.0
      %1977 = vmatprep.subr.mxu0 0.0
      %1978 = vmatpush1.msra.mxu0 0.0
      %1979 = vmatprep.subr.mxu0 0.0
      %1980 = vmatpush1.msra.mxu0 0.0
      %1981 = vmatprep.subr.mxu0 0.0
      %1982 = vmatpush1.msra.mxu0 0.0
      %1983 = vmatprep.subr.mxu0 0.0
      %1984 = vmatpush1.msra.mxu0 0.0
      %1985 = vmatprep.subr.mxu0 0.0
      %1986 = vmatpush1.msra.mxu0 0.0
      %1987 = vmatprep.subr.mxu0 0.0
      %1988 = vmatpush1.msra.mxu0 0.0
      %1989 = vmatprep.subr.mxu0 0.0
      %1990 = vmatpush1.msra.mxu0 0.0
      %1991 = vmatprep.subr.mxu0 0.0
      %1992 = vmatpush1.msra.mxu0 0.0
      %1993 = vmatprep.subr.mxu0 0.0
      %1994 = vmatpush1.msra.mxu0 0.0
      %1995 = vmatprep.subr.mxu0 0.0
      %1996 = vmatpush1.msra.mxu0 0.0
      %1997 = vmatprep.subr.mxu0 0.0
      %1998 = vmatpush1.msra.mxu0 0.0
      %1999 = vmatprep.subr.mxu0 0.0
      %2000 = vmatpush1.msra.mxu0 0.0
      %2001 = vmatprep.mubr.f32.mxu0 0.0
      %2002 = vmatmul.mubr.f32.gmra.mrb[0].mxu0 %v1838
      %v2003 = vpop.f32.mrb[0].mxu0
      %v2004 = vadd.f32 %v1834, %v2003
      %v2005 = vpop.f32.mrb[0].mxu0
      %2006 = vmatprep.mubr.f32.mxu0 0.0
      %2007 = vmatmul.mubr.f32.gmra.mrb[0].mxu0 %v1841
      %v2008 = vpop.f32.mrb[0].mxu0
      %v2009 = vadd.f32 %v1834, %v2008
      %v2010 = vpop.f32.mrb[0].mxu0
      %2011 = vmatprep.mubr.f32.mxu0 0.0
      %2012 = vmatmul.mubr.f32.gmra.mrb[0].mxu0 %v1844
      %v2013 = vpop.f32.mrb[0].mxu0
      %v2014 = vadd.f32 %v1834, %v2013
      %v2015 = vpop.f32.mrb[0].mxu0
      %2016 = vmatprep.mubr.f32.mxu0 0.0
      %2017 = vmatmul.mubr.f32.gmra.mrb[0].mxu0 %v1847
      %v2018 = vpop.f32.mrb[0].mxu0
      %v2019 = vadd.f32 %v1834, %v2018
      %v2020 = vpop.f32.mrb[0].mxu0
      %2021 = vmatprep.mubr.f32.mxu0 0.0
      %2022 = vmatmul.mubr.f32.gmra.mrb[0].mxu0 %v1850
      %v2023 = vpop.f32.mrb[0].mxu0
      %v2024 = vadd.f32 %v1834, %v2023
      %v2025 = vpop.f32.mrb[0].mxu0
      %2026 = vmatprep.mubr.f32.mxu0 0.0
      %2027 = vmatmul.mubr.f32.gmra.mrb[0].mxu0 %v1853
      %v2028 = vpop.f32.mrb[0].mxu0
      %v2029 = vadd.f32 %v1834, %v2028
      %v2030 = vpop.f32.mrb[0].mxu0
      %2031 = vmatprep.mubr.f32.mxu0 0.0
      %2032 = vmatmul.mubr.f32.gmra.mrb[0].mxu0 %v1856
      %v2033 = vpop.f32.mrb[0].mxu0
      %v2034 = vadd.f32 %v1834, %v2033
      %v2035 = vpop.f32.mrb[0].mxu0
      %2036 = vmatprep.mubr.f32.mxu0 0.0
      %2037 = vmatmul.mubr.f32.gmra.mrb[0].mxu0 %v1859
      %v2038 = vpop.f32.mrb[0].mxu0
      %v2039 = vadd.f32 %v1834, %v2038
      %v2040 = vpop.f32.mrb[0].mxu0
      %2041 = vmatprep.mubr.f32.mxu0 0.0
      %2042 = vmatmul.mubr.f32.gmra.mrb[0].mxu0 %v1862
      %v2043 = vpop.f32.mrb[0].mxu0
      %v2044 = vadd.f32 %v1834, %v2043
      %v2045 = vpop.f32.mrb[0].mxu0
      %2046 = vmatprep.mubr.f32.mxu0 0.0
      %2047 = vmatmul.mubr.f32.gmra.mrb[0].mxu0 %v1865
      %v2048 = vpop.f32.mrb[0].mxu0
      %v2049 = vadd.f32 %v1834, %v2048
      %v2050 = vpop.f32.mrb[0].mxu0
      %2051 = vmatprep.mubr.f32.mxu0 0.0
      %2052 = vmatmul.mubr.f32.gmra.mrb[0].mxu0 %v1868
      %v2053 = vpop.f32.mrb[0].mxu0
      %v2054 = vadd.f32 %v1834, %v2053
      %v2055 = vpop.f32.mrb[0].mxu0
      %2056 = vmatprep.mubr.f32.mxu0 0.0
      %2057 = vmatmul.mubr.f32.gmra.mrb[0].mxu0 %v1871
      %v2058 = vpop.f32.mrb[0].mxu0
      %v2059 = vadd.f32 %v1834, %v2058
      %v2060 = vpop.f32.mrb[0].mxu0
      %2061 = vmatprep.mubr.f32.mxu0 0.0
      %2062 = vmatmul.mubr.f32.gmra.mrb[0].mxu0 %v1874
      %v2063 = vpop.f32.mrb[0].mxu0
      %v2064 = vadd.f32 %v1834, %v2063
      %v2065 = vpop.f32.mrb[0].mxu0
      %2066 = vmatprep.mubr.f32.mxu0 0.0
      %2067 = vmatmul.mubr.f32.gmra.mrb[0].mxu0 %v1877
      %v2068 = vpop.f32.mrb[0].mxu0
      %v2069 = vadd.f32 %v1834, %v2068
      %v2070 = vpop.f32.mrb[0].mxu0
      %2071 = vmatprep.mubr.f32.mxu0 0.0
      %2072 = vmatmul.mubr.f32.gmra.mrb[0].mxu0 %v1880
      %v2073 = vpop.f32.mrb[0].mxu0
      %v2074 = vadd.f32 %v1834, %v2073
      %v2075 = vpop.f32.mrb[0].mxu0
      %2076 = vmatprep.mubr.f32.mxu0 0.0
      %2077 = vmatmul.mubr.f32.gmra.mrb[0].mxu0 %v1883
      %v2078 = vpop.f32.mrb[0].mxu0
      %v2079 = vadd.f32 %v1834, %v2078
      %v2080 = vpop.f32.mrb[0].mxu0
      %2081 = vmatprep.mubr.f32.mxu0 0.0
      %2082 = vmatmul.mubr.f32.gmra.mrb[0].mxu0 %v1886
      %v2083 = vpop.f32.mrb[0].mxu0
      %v2084 = vadd.f32 %v1834, %v2083
      %v2085 = vpop.f32.mrb[0].mxu0
      %2086 = vmatprep.mubr.f32.mxu0 0.0
      %2087 = vmatmul.mubr.f32.gmra.mrb[0].mxu0 %v1889
      %v2088 = vpop.f32.mrb[0].mxu0
      %v2089 = vadd.f32 %v1834, %v2088
      %v2090 = vpop.f32.mrb[0].mxu0
      %2091 = vmatprep.mubr.f32.mxu0 0.0
      %2092 = vmatmul.mubr.f32.gmra.mrb[0].mxu0 %v1892
      %v2093 = vpop.f32.mrb[0].mxu0
      %v2094 = vadd.f32 %v1834, %v2093
      %v2095 = vpop.f32.mrb[0].mxu0
      %2096 = vmatprep.mubr.f32.mxu0 0.0
      %2097 = vmatmul.mubr.f32.gmra.mrb[0].mxu0 %v1895
      %v2098 = vpop.f32.mrb[0].mxu0
      %v2099 = vadd.f32 %v1834, %v2098
      %v2100 = vpop.f32.mrb[0].mxu0
      %2101 = vmatprep.mubr.f32.mxu0 0.0
      %2102 = vmatmul.mubr.f32.gmra.mrb[0].mxu0 %v1898
      %v2103 = vpop.f32.mrb[0].mxu0
      %v2104 = vadd.f32 %v1834, %v2103
      %v2105 = vpop.f32.mrb[0].mxu0
      %2106 = vmatprep.mubr.f32.mxu0 0.0
      %2107 = vmatmul.mubr.f32.gmra.mrb[0].mxu0 %v1901
      %v2108 = vpop.f32.mrb[0].mxu0
      %v2109 = vadd.f32 %v1834, %v2108
      %v2110 = vpop.f32.mrb[0].mxu0
      %2111 = vmatprep.mubr.f32.mxu0 0.0
      %2112 = vmatmul.mubr.f32.gmra.mrb[0].mxu0 %v1904
      %v2113 = vpop.f32.mrb[0].mxu0
      %v2114 = vadd.f32 %v1834, %v2113
      %v2115 = vpop.f32.mrb[0].mxu0
      %2116 = vmatprep.mubr.f32.mxu0 0.0
      %2117 = vmatmul.mubr.f32.gmra.mrb[0].mxu0 %v1907
      %v2118 = vpop.f32.mrb[0].mxu0
      %v2119 = vadd.f32 %v1834, %v2118
      %v2120 = vpop.f32.mrb[0].mxu0
      %2121 = vmatprep.mubr.f32.mxu0 0.0
      %2122 = vmatmul.mubr.f32.gmra.mrb[0].mxu0 %v1910
      %v2123 = vpop.f32.mrb[0].mxu0
      %v2124 = vadd.f32 %v1834, %v2123
      %v2125 = vpop.f32.mrb[0].mxu0
      %2126 = vmatprep.mubr.f32.mxu0 0.0
      %2127 = vmatmul.mubr.f32.gmra.mrb[0].mxu0 %v1913
      %v2128 = vpop.f32.mrb[0].mxu0
      %v2129 = vadd.f32 %v1834, %v2128
      %v2130 = vpop.f32.mrb[0].mxu0
      %2131 = vmatprep.mubr.f32.mxu0 0.0
      %2132 = vmatmul.mubr.f32.gmra.mrb[0].mxu0 %v1916
      %v2133 = vpop.f32.mrb[0].mxu0
      %v2134 = vadd.f32 %v1834, %v2133
      %v2135 = vpop.f32.mrb[0].mxu0
      %2136 = vmatprep.mubr.f32.mxu0 0.0
      %2137 = vmatmul.mubr.f32.gmra.mrb[0].mxu0 %v1919
      %v2138 = vpop.f32.mrb[0].mxu0
      %v2139 = vadd.f32 %v1834, %v2138
      %v2140 = vpop.f32.mrb[0].mxu0
      %2141 = vmatprep.mubr.f32.mxu0 0.0
      %2142 = vmatmul.mubr.f32.gmra.mrb[0].mxu0 %v1922
      %v2143 = vpop.f32.mrb[0].mxu0
      %v2144 = vadd.f32 %v1834, %v2143
      %v2145 = vpop.f32.mrb[0].mxu0
      %2146 = vmatprep.mubr.f32.mxu0 0.0
      %2147 = vmatmul.mubr.f32.gmra.mrb[0].mxu0 %v1925
      %v2148 = vpop.f32.mrb[0].mxu0
      %v2149 = vadd.f32 %v1834, %v2148
      %v2150 = vpop.f32.mrb[0].mxu0
      %2151 = vmatprep.mubr.f32.mxu0 0.0
      %2152 = vmatmul.mubr.f32.gmra.mrb[0].mxu0 %v1928
      %v2153 = vpop.f32.mrb[0].mxu0
      %v2154 = vadd.f32 %v1834, %v2153
      %v2155 = vpop.f32.mrb[0].mxu0
      %2156 = vmatprep.mubr.f32.mxu0 0.0
      %2157 = vmatmul.mubr.f32.gmra.mrb[0].mxu0 %v1931
      %v2158 = vpop.f32.mrb[0].mxu0
      %v2159 = vadd.f32 %v1834, %v2158
      %v2160 = vpop.f32.mrb[0].mxu0
      %2161 = vdwg.mxu0
      %v2162 = vsub.f32 0.0, %v2004
      %v2163 = vsub.f32 0.0, %v2009
      %v2164 = vsub.f32 0.0, %v2014
      %v2165 = vsub.f32 0.0, %v2019
      %v2166 = vsub.f32 0.0, %v2024
      %v2167 = vsub.f32 0.0, %v2029
      %v2168 = vsub.f32 0.0, %v2034
      %v2169 = vsub.f32 0.0, %v2039
      %v2170 = vsub.f32 0.0, %v2044
      %v2171 = vsub.f32 0.0, %v2049
      %v2172 = vsub.f32 0.0, %v2054
      %v2173 = vsub.f32 0.0, %v2059
      %v2174 = vsub.f32 0.0, %v2064
      %v2175 = vsub.f32 0.0, %v2069
      %v2176 = vsub.f32 0.0, %v2074
      %v2177 = vsub.f32 0.0, %v2079
      %v2178 = vsub.f32 0.0, %v2084
      %v2179 = vsub.f32 0.0, %v2089
      %v2180 = vsub.f32 0.0, %v2094
      %v2181 = vsub.f32 0.0, %v2099
      %v2182 = vsub.f32 0.0, %v2104
      %v2183 = vsub.f32 0.0, %v2109
      %v2184 = vsub.f32 0.0, %v2114
      %v2185 = vsub.f32 0.0, %v2119
      %v2186 = vsub.f32 0.0, %v2124
      %v2187 = vsub.f32 0.0, %v2129
      %v2188 = vsub.f32 0.0, %v2134
      %v2189 = vsub.f32 0.0, %v2139
      %v2190 = vsub.f32 0.0, %v2144
      %v2191 = vsub.f32 0.0, %v2149
      %v2192 = vsub.f32 0.0, %v2154
      %v2193 = vsub.f32 0.0, %v2159
      %v2194 = vmul.f32 %v2162, 1.442695
      %v2195 = vpow.pop %v2194
      %v2196 = vmul.f32 %v2163, 1.442695
      %v2197 = vpow.pop %v2196
      %v2198 = vmul.f32 %v2164, 1.442695
      %v2199 = vpow.pop %v2198
      %v2200 = vmul.f32 %v2165, 1.442695
      %v2201 = vpow.pop %v2200
      %v2202 = vmul.f32 %v2166, 1.442695
      %v2203 = vpow.pop %v2202
      %v2204 = vmul.f32 %v2167, 1.442695
      %v2205 = vpow.pop %v2204
      %v2206 = vmul.f32 %v2168, 1.442695
      %v2207 = vpow.pop %v2206
      %v2208 = vmul.f32 %v2169, 1.442695
      %v2209 = vpow.pop %v2208
      %v2210 = vmul.f32 %v2170, 1.442695
      %v2211 = vpow.pop %v2210
      %v2212 = vmul.f32 %v2171, 1.442695
      %v2213 = vpow.pop %v2212
      %v2214 = vmul.f32 %v2172, 1.442695
      %v2215 = vpow.pop %v2214
      %v2216 = vmul.f32 %v2173, 1.442695
      %v2217 = vpow.pop %v2216
      %v2218 = vmul.f32 %v2174, 1.442695
      %v2219 = vpow.pop %v2218
      %v2220 = vmul.f32 %v2175, 1.442695
      %v2221 = vpow.pop %v2220
      %v2222 = vmul.f32 %v2176, 1.442695
      %v2223 = vpow.pop %v2222
      %v2224 = vmul.f32 %v2177, 1.442695
      %v2225 = vpow.pop %v2224
      %v2226 = vmul.f32 %v2178, 1.442695
      %v2227 = vpow.pop %v2226
      %v2228 = vmul.f32 %v2179, 1.442695
      %v2229 = vpow.pop %v2228
      %v2230 = vmul.f32 %v2180, 1.442695
      %v2231 = vpow.pop %v2230
      %v2232 = vmul.f32 %v2181, 1.442695
      %v2233 = vpow.pop %v2232
      %v2234 = vmul.f32 %v2182, 1.442695
      %v2235 = vpow.pop %v2234
      %v2236 = vmul.f32 %v2183, 1.442695
      %v2237 = vpow.pop %v2236
      %v2238 = vmul.f32 %v2184, 1.442695
      %v2239 = vpow.pop %v2238
      %v2240 = vmul.f32 %v2185, 1.442695
      %v2241 = vpow.pop %v2240
      %v2242 = vmul.f32 %v2186, 1.442695
      %v2243 = vpow.pop %v2242
      %v2244 = vmul.f32 %v2187, 1.442695
      %v2245 = vpow.pop %v2244
      %v2246 = vmul.f32 %v2188, 1.442695
      %v2247 = vpow.pop %v2246
      %v2248 = vmul.f32 %v2189, 1.442695
      %v2249 = vpow.pop %v2248
      %v2250 = vmul.f32 %v2190, 1.442695
      %v2251 = vpow.pop %v2250
      %v2252 = vmul.f32 %v2191, 1.442695
      %v2253 = vpow.pop %v2252
      %v2254 = vmul.f32 %v2192, 1.442695
      %v2255 = vpow.pop %v2254
      %v2256 = vmul.f32 %v2193, 1.442695
      %v2257 = vpow.pop %v2256
      %v2258 = vadd.f32 %v2195, 1.0
      %v2259 = vadd.f32 %v2197, 1.0
      %v2260 = vadd.f32 %v2199, 1.0
      %v2261 = vadd.f32 %v2201, 1.0
      %v2262 = vadd.f32 %v2203, 1.0
      %v2263 = vadd.f32 %v2205, 1.0
      %v2264 = vadd.f32 %v2207, 1.0
      %v2265 = vadd.f32 %v2209, 1.0
      %v2266 = vadd.f32 %v2211, 1.0
      %v2267 = vadd.f32 %v2213, 1.0
      %v2268 = vadd.f32 %v2215, 1.0
      %v2269 = vadd.f32 %v2217, 1.0
      %v2270 = vadd.f32 %v2219, 1.0
      %v2271 = vadd.f32 %v2221, 1.0
      %v2272 = vadd.f32 %v2223, 1.0
      %v2273 = vadd.f32 %v2225, 1.0
      %v2274 = vadd.f32 %v2227, 1.0
      %v2275 = vadd.f32 %v2229, 1.0
      %v2276 = vadd.f32 %v2231, 1.0
      %v2277 = vadd.f32 %v2233, 1.0
      %v2278 = vadd.f32 %v2235, 1.0
      %v2279 = vadd.f32 %v2237, 1.0
      %v2280 = vadd.f32 %v2239, 1.0
      %v2281 = vadd.f32 %v2241, 1.0
      %v2282 = vadd.f32 %v2243, 1.0
      %v2283 = vadd.f32 %v2245, 1.0
      %v2284 = vadd.f32 %v2247, 1.0
      %v2285 = vadd.f32 %v2249, 1.0
      %v2286 = vadd.f32 %v2251, 1.0
      %v2287 = vadd.f32 %v2253, 1.0
      %v2288 = vadd.f32 %v2255, 1.0
      %v2289 = vadd.f32 %v2257, 1.0
      %v2290 = vrcp.pop %v2258
      %v2291 = vrcp.pop %v2259
      %v2292 = vrcp.pop %v2260
      %v2293 = vrcp.pop %v2261
      %v2294 = vrcp.pop %v2262
      %v2295 = vrcp.pop %v2263
      %v2296 = vrcp.pop %v2264
      %v2297 = vrcp.pop %v2265
      %v2298 = vrcp.pop %v2266
      %v2299 = vrcp.pop %v2267
      %v2300 = vrcp.pop %v2268
      %v2301 = vrcp.pop %v2269
      %v2302 = vrcp.pop %v2270
      %v2303 = vrcp.pop %v2271
      %v2304 = vrcp.pop %v2272
      %v2305 = vrcp.pop %v2273
      %v2306 = vrcp.pop %v2274
      %v2307 = vrcp.pop %v2275
      %v2308 = vrcp.pop %v2276
      %v2309 = vrcp.pop %v2277
      %v2310 = vrcp.pop %v2278
      %v2311 = vrcp.pop %v2279
      %v2312 = vrcp.pop %v2280
      %v2313 = vrcp.pop %v2281
      %v2314 = vrcp.pop %v2282
      %v2315 = vrcp.pop %v2283
      %v2316 = vrcp.pop %v2284
      %v2317 = vrcp.pop %v2285
      %v2318 = vrcp.pop %v2286
      %v2319 = vrcp.pop %v2287
      %v2320 = vrcp.pop %v2288
      %v2321 = vrcp.pop %v2289
      %v2322 = vmul.f32 %v2004, %v2290
      %v2323 = vmul.f32 %v2009, %v2291
      %v2324 = vmul.f32 %v2014, %v2292
      %v2325 = vmul.f32 %v2019, %v2293
      %v2326 = vmul.f32 %v2024, %v2294
      %v2327 = vmul.f32 %v2029, %v2295
      %v2328 = vmul.f32 %v2034, %v2296
      %v2329 = vmul.f32 %v2039, %v2297
      %v2330 = vmul.f32 %v2044, %v2298
      %v2331 = vmul.f32 %v2049, %v2299
      %v2332 = vmul.f32 %v2054, %v2300
      %v2333 = vmul.f32 %v2059, %v2301
      %v2334 = vmul.f32 %v2064, %v2302
      %v2335 = vmul.f32 %v2069, %v2303
      %v2336 = vmul.f32 %v2074, %v2304
      %v2337 = vmul.f32 %v2079, %v2305
      %v2338 = vmul.f32 %v2084, %v2306
      %v2339 = vmul.f32 %v2089, %v2307
      %v2340 = vmul.f32 %v2094, %v2308
      %v2341 = vmul.f32 %v2099, %v2309
      %v2342 = vmul.f32 %v2104, %v2310
      %v2343 = vmul.f32 %v2109, %v2311
      %v2344 = vmul.f32 %v2114, %v2312
      %v2345 = vmul.f32 %v2119, %v2313
      %v2346 = vmul.f32 %v2124, %v2314
      %v2347 = vmul.f32 %v2129, %v2315
      %v2348 = vmul.f32 %v2134, %v2316
      %v2349 = vmul.f32 %v2139, %v2317
      %v2350 = vmul.f32 %v2144, %v2318
      %v2351 = vmul.f32 %v2149, %v2319
      %v2352 = vmul.f32 %v2154, %v2320
      %v2353 = vmul.f32 %v2159, %v2321
      %2354 = vst.msk [vmem:[%s238] sm:$0xff] %vm1593, %v2322
      %2355 = vst.msk [vmem:[%s238 + $0x8] sm:$0xff] %vm1593, %v2323
      %2356 = vst.msk [vmem:[%s238 + $0x10] sm:$0xff] %vm1593, %v2324
      %2357 = vst.msk [vmem:[%s238 + $0x18] sm:$0xff] %vm1593, %v2325
      %2358 = vst.msk [vmem:[%s238 + $0x20] sm:$0xff] %vm1593, %v2326
      %2359 = vst.msk [vmem:[%s238 + $0x28] sm:$0xff] %vm1593, %v2327
      %2360 = vst.msk [vmem:[%s238 + $0x30] sm:$0xff] %vm1593, %v2328
      %2361 = vst.msk [vmem:[%s238 + $0x38] sm:$0xff] %vm1593, %v2329
      %2362 = vst.msk [vmem:[%s238 + $0x40] sm:$0xff] %vm1593, %v2330
      %2363 = vst.msk [vmem:[%s238 + $0x48] sm:$0xff] %vm1593, %v2331
      %2364 = vst.msk [vmem:[%s238 + $0x50] sm:$0xff] %vm1593, %v2332
      %2365 = vst.msk [vmem:[%s238 + $0x58] sm:$0xff] %vm1593, %v2333
      %2366 = vst.msk [vmem:[%s238 + $0x60] sm:$0xff] %vm1593, %v2334
      %2367 = vst.msk [vmem:[%s238 + $0x68] sm:$0xff] %vm1593, %v2335
      %2368 = vst.msk [vmem:[%s238 + $0x70] sm:$0xff] %vm1593, %v2336
      %2369 = vst.msk [vmem:[%s238 + $0x78] sm:$0xff] %vm1593, %v2337
      %2370 = vst.msk [vmem:[%s238 + $0x80] sm:$0xff] %vm1593, %v2338
      %2371 = vst.msk [vmem:[%s238 + $0x88] sm:$0xff] %vm1593, %v2339
      %2372 = vst.msk [vmem:[%s238 + $0x90] sm:$0xff] %vm1593, %v2340
      %2373 = vst.msk [vmem:[%s238 + $0x98] sm:$0xff] %vm1593, %v2341
      %2374 = vst.msk [vmem:[%s238 + $0xa0] sm:$0xff] %vm1593, %v2342
      %2375 = vst.msk [vmem:[%s238 + $0xa8] sm:$0xff] %vm1593, %v2343
      %2376 = vst.msk [vmem:[%s238 + $0xb0] sm:$0xff] %vm1593, %v2344
      %2377 = vst.msk [vmem:[%s238 + $0xb8] sm:$0xff] %vm1593, %v2345
      %2378 = vst.msk [vmem:[%s238 + $0xc0] sm:$0xff] %vm1593, %v2346
      %2379 = vst.msk [vmem:[%s238 + $0xc8] sm:$0xff] %vm1593, %v2347
      %2380 = vst.msk [vmem:[%s238 + $0xd0] sm:$0xff] %vm1593, %v2348
      %2381 = vst.msk [vmem:[%s238 + $0xd8] sm:$0xff] %vm1593, %v2349
      %2382 = vst.msk [vmem:[%s238 + $0xe0] sm:$0xff] %vm1593, %v2350
      %2383 = vst.msk [vmem:[%s238 + $0xe8] sm:$0xff] %vm1593, %v2351
      %2384 = vst.msk [vmem:[%s238 + $0xf0] sm:$0xff] %vm1593, %v2352
      %2385 = vst.msk [vmem:[%s238 + $0xf8] sm:$0xff] %vm1593, %v2353
      %p2386 = scmp.lt.s32.totalorder %s19, 1
      %s2387 = scalar_select %p2386, %s19, 1
      %p2388 = scmp.lt.s32.totalorder %s21, 0
      %s2389 = scalar_select %p2388, %s21, 0
      %p2390 = scmp.lt.s32.totalorder %s20, 0
      %s2391 = scalar_select %p2390, %s20, 0
      %s2392 = smul.addr %s2389, 32
      %s2393 = sadd.s32 %s2391, %s2392
      %s2394 = smul.addr %s2387, 32
      %s2395 = sadd.s32 %s2393, %s2394
      %s2396 = smul.addr %s2395, 8
      %s2397 = scalar_lea.vmem %s3, %s2396
      // Predicated region
      $region33: #{tpu_custom_call.1} parent=31 // pred_check
        %p2398 = pneg %p133
      $region34: #{tpu_custom_call.1} parent=31 // pred_check_branch
        %2400 = sbr.rel (%p2398) target = $region36
      $region35: #{tpu_custom_call.1} parent=31 // pred_region
        _
      $region36: #{tpu_custom_call.1} parent=31 // pred_fallthru
        _
    $region32: #{tpu_custom_call.1} parent=5 // pred_fallthru
      _
    %p2401 = scmp.le.s32.totalorder 2, %s9
    // Predicated region
    $region37: #{tpu_custom_call.1} parent=5 // pred_check
      %p2402 = pneg %p2401
    $region38: #{tpu_custom_call.1} parent=5 // pred_check_branch
      %2404 = sbr.rel (%p2402) target = $region40
    $region39: #{tpu_custom_call.1} parent=5 // pred_region
      %s2405 = ssub.s32 %s9, 2
      // Predicated region
      $region41: #{tpu_custom_call.1} parent=39 // pred_check
        %p2406 = pneg %p139
      $region42: #{tpu_custom_call.1} parent=39 // pred_check_branch
        %2408 = sbr.rel (%p2406) target = $region44
      $region43: #{tpu_custom_call.1} parent=39 // pred_region
        %p2409 = scmp.lt.s32.totalorder %s22, 1
        %s2410 = scalar_select %p2409, %s22, 1
        %p2411 = scmp.lt.s32.totalorder %s24, 0
        %s2412 = scalar_select %p2411, %s24, 0
        %p2413 = scmp.lt.s32.totalorder %s23, 0
        %s2414 = scalar_select %p2413, %s23, 0
        %s2415 = smul.addr %s2412, 32
        %s2416 = sadd.s32 %s2414, %s2415
        %s2417 = smul.addr %s2410, 32
        %s2418 = sadd.s32 %s2416, %s2417
        %s2419 = smul.addr %s2418, 8
        %s2420 = scalar_lea.vmem %s3, %s2419
      $region44: #{tpu_custom_call.1} parent=39 // pred_fallthru
        _
    $region40: #{tpu_custom_call.1} parent=5 // pred_fallthru
      _
  $region6: #{tpu_custom_call.1} parent=0 // loop_footer
    %s13 = sadd.s32 1, %s9
  $region7: #{tpu_custom_call.1} parent=0 // loop_footer_branch
    %8 = sbr.rel target = $region3
  $region8: #{tpu_custom_call.1} parent=0 // loop_exit
    _

</llo_original>
